<compile_context>
chip_gen: v7x
topology: tpu7x:2x2x1
jax: 0.10.0
libtpu: 0.0.40
codegen_flags: <defaults>
</compile_context>

<pallas_src>
import functools

import jax
import jax.numpy as jnp
import numpy as np
from jax.experimental import pallas as pl
from jax.experimental.pallas import tpu as pltpu


def _round_up(a, m):
    return -(-a // m) * m


def _vmem_capacity_bytes():
    """Physical per-core VMEM; falls back to the v7x-safe 64 MiB."""
    try:
        info = pltpu.get_tpu_info()
        cap = getattr(info, "vmem_capacity_bytes", None)
        if cap:
            return int(cap)
    except Exception:
        pass
    return 64 * 2**20


def _pick_tile_rows(H_out, WA, WP, Cin_p, Cout_p, K, B, vmem_budget):
    """Output rows per grid step, sized against the per-generation VMEM budget."""
    step = max(K - 1, 1)                       # halo block-index divisibility
    in_row = WP * Cin_p * 2                    # bf16 body block, per row
    out_row = WA * Cout_p * 4                  # f32 output block, per row
    buf_row = WP * Cin_p * 4                   # f32 assembled-window scratch
    itm_row = 3 * WA * Cin_p * 4 + WA * Cin_p * 2 + 2 * WA * Cout_p * 4
    per_row = 2 * in_row + 2 * out_row + buf_row + itm_row
    fixed = (2 * (K * K + 1) * Cin_p * 4              # dw weight+bias (double-buf)
             + 2 * (Cin_p * Cout_p * 2 + Cout_p * 4)  # pw weight+bias (double-buf)
             + 2 * step * WP * Cin_p * 2              # halo blocks (double-buf)
             + step * WP * Cin_p * 4)                 # halo rows of scratch
    th = max(step, int((vmem_budget - fixed) // per_row))
    th = max(step, (th // step) * step)
    th_img = _round_up(H_out, step)                   # whole image in one tile
    th = min(th, th_img)
    # Keep >=2 grid steps so v7x's second TensorCore has work when batch==1.
    if B == 1 and th >= th_img and H_out > step:
        th = min(th, _round_up(-(-H_out // 2), step))
    return th


def _sepconv_kernel(*refs, TH, WA, K, has_halo):
    if has_halo:
        body_ref, halo_ref, wdw_ref, bdw_ref, wpw_ref, bpw_ref, o_ref, xbuf_ref = refs
    else:
        body_ref, wdw_ref, bdw_ref, wpw_ref, bpw_ref, o_ref, xbuf_ref = refs
        halo_ref = None

    # Assemble the (TH + K - 1)-row window: bf16 DMA blocks -> one f32 scratch.
    xbuf_ref[pl.ds(0, TH)] = body_ref[...].astype(jnp.float32)
    if has_halo:
        xbuf_ref[pl.ds(TH, K - 1)] = halo_ref[...].astype(jnp.float32)

    # ---- depthwise KxK conv: K*K shifted VPU MACs, taps loaded with static
    # offsets straight from the scratch ref; 2 independent partial sums. ----
    acc = [None, None]
    for dy in range(K):
        for dx in range(K):
            k = dy * K + dx
            tap = xbuf_ref[pl.ds(dy, TH), pl.ds(dx, WA)]       # (TH, WA, CIN) f32
            term = tap * wdw_ref[k:k + 1, :]                   # (1, CIN) broadcast
            acc[k & 1] = term if acc[k & 1] is None else acc[k & 1] + term
    dw = acc[0] if acc[1] is None else acc[0] + acc[1]
    dw = dw + bdw_ref[...]                                     # (1, CIN) broadcast

    # ---- act_layer = nn.ReLU (module default) ----
    act = jnp.maximum(dw, 0.0)                                 # (TH, WA, CIN)

    # ---- pointwise 1x1 conv: bf16 MXU matmul, f32 accumulation ----
    y = act.reshape(TH * WA, -1).astype(jnp.bfloat16)
    out = jnp.dot(y, wpw_ref[...], preferred_element_type=jnp.float32)
    out = out + bpw_ref[...]                                   # (1, COUT) broadcast
    o_ref[...] = out.reshape(TH, WA, -1).astype(o_ref.dtype)


def sepconv2d_pallas(x, w_dw, b_dw, w_pw, b_pw, *,
                     kernel_size=3, padding=1, stride=1, dilation=1,
                     row_tile=None, nhwc_out=False):
    """SepConv2d forward.

    x:     (B, Cin, H, W)    NCHW (PyTorch layout)
    w_dw:  (Cin, 1, K, K)    depthwise weight, b_dw: (Cin,)
    w_pw:  (Cout, Cin, 1, 1) pointwise weight, b_pw: (Cout,)
    returns (B, Cout, H_out, W_out) (or NHWC if nhwc_out=True).
    """
    assert stride == 1 and dilation == 1, "kernel supports stride=1, dilation=1"
    B, Cin, H, W = x.shape
    K, P = kernel_size, padding
    Cout = w_pw.shape[0]
    assert w_dw.shape == (Cin, 1, K, K)
    H_out = H + 2 * P - K + 1
    W_out = W + 2 * P - K + 1
    assert H_out > 0 and W_out > 0

    LANE, SUB = 128, 8
    Cin_p = _round_up(Cin, LANE)                 # lane-dense channels
    Cout_p = _round_up(Cout, LANE)
    WA = _round_up(W_out, SUB)                   # sublane-aligned output width
    WP = WA + _round_up(K, SUB)                  # padded input width (>= WA + K)

    # Per-generation VMEM budget: ~50 MiB on v7x (64 MiB), ~100 MiB on v5e/v6e.
    vmem_cap = _vmem_capacity_bytes()
    vmem_limit = int(min(vmem_cap * 25 // 32, 100 * 2**20))
    step = max(K - 1, 1)
    if row_tile is None:
        TH = _pick_tile_rows(H_out, WA, WP, Cin_p, Cout_p, K, B,
                             int(vmem_limit * 0.7))
    else:
        TH = max(step, _round_up(row_tile, step))
    nT = -(-H_out // TH)
    H_pad = nT * TH
    has_halo = K > 1
    halo_rows = K - 1
    halo_stride = TH // halo_rows if has_halo else 0   # block-index stride

    # ---- wrapper-side layout plumbing (once): NCHW -> zero-padded bf16 NHWC ----
    xt = jnp.transpose(x, (0, 2, 3, 1)).astype(jnp.bfloat16)
    xt = jnp.pad(xt, ((0, 0),
                      (P, H_pad + K - 1 - P - H),
                      (P, WP - P - W),
                      (0, Cin_p - Cin)))         # (B, H_pad + K - 1, WP, Cin_p)

    # depthwise weight -> (K*K, Cin_p), tap index k = dy*K + dx
    wdw = jnp.pad(w_dw.reshape(Cin, K * K).T.astype(jnp.float32),
                  ((0, 0), (0, Cin_p - Cin)))
    bdw = jnp.pad(b_dw.reshape(1, Cin).astype(jnp.float32),
                  ((0, 0), (0, Cin_p - Cin)))
    # pointwise weight -> (Cin_p, Cout_p) bf16 for the MXU (zero-padded rows/cols)
    wpw = jnp.pad(w_pw.reshape(Cout, Cin).T,
                  ((0, Cin_p - Cin), (0, Cout_p - Cout))).astype(jnp.bfloat16)
    bpw = jnp.pad(b_pw.reshape(1, Cout).astype(jnp.float32),
                  ((0, 0), (0, Cout_p - Cout)))

    kernel = functools.partial(_sepconv_kernel, TH=TH, WA=WA, K=K,
                               has_halo=has_halo)

    # Non-overlapping TH-row body blocks + tiny (K-1)-row halo blocks of the
    # same array: no gathered/overlapped copy of the input in HBM.
    in_specs = [pl.BlockSpec((None, TH, WP, Cin_p), lambda b, t: (b, t, 0, 0))]
    args = [xt]
    if has_halo:
        in_specs.append(
            pl.BlockSpec((None, halo_rows, WP, Cin_p),
                         lambda b, t: (b, (t + 1) * halo_stride, 0, 0)))
        args.append(xt)
    in_specs += [
        pl.BlockSpec((K * K, Cin_p), lambda b, t: (0, 0)),    # dw weight
        pl.BlockSpec((1, Cin_p), lambda b, t: (0, 0)),        # dw bias
        pl.BlockSpec((Cin_p, Cout_p), lambda b, t: (0, 0)),   # pw weight
        pl.BlockSpec((1, Cout_p), lambda b, t: (0, 0)),       # pw bias
    ]
    args += [wdw, bdw, wpw, bpw]

    out_nhwc = pl.pallas_call(
        kernel,
        out_shape=jax.ShapeDtypeStruct((B, H_pad, WA, Cout_p), x.dtype),
        grid_spec=pltpu.PrefetchScalarGridSpec(
            num_scalar_prefetch=0,
            grid=(B, nT),
            in_specs=in_specs,
            out_specs=pl.BlockSpec((None, TH, WA, Cout_p),
                                   lambda b, t: (b, t, 0, 0)),
            scratch_shapes=[pltpu.VMEM((TH + K - 1, WP, Cin_p), jnp.float32)],
        ),
        compiler_params=pltpu.CompilerParams(
            dimension_semantics=("parallel", "parallel"),
            vmem_limit_bytes=vmem_limit),
    )(*args)

    out = out_nhwc[:, :H_out, :W_out, :Cout]
    if nhwc_out:
        return out                               # skip the transpose if caller is NHWC
    return jnp.transpose(out, (0, 3, 1, 2))      # back to NCHW (module semantics)


def sepconv2d_reference(x, w_dw, b_dw, w_pw, b_pw, *, padding=1):
    """Pure-JAX/XLA reference mirroring PyTorch SepConv2d (f32)."""
    Cin = x.shape[1]
    Cout = w_pw.shape[0]
    y = jax.lax.conv_general_dilated(
        x, w_dw, window_strides=(1, 1),
        padding=((padding, padding), (padding, padding)),
        dimension_numbers=("NCHW", "OIHW", "NCHW"),
        feature_group_count=Cin)
    y = jnp.maximum(y + b_dw.reshape(1, Cin, 1, 1), 0.0)          # nn.ReLU
    out = jax.lax.conv_general_dilated(
        y, w_pw, window_strides=(1, 1), padding="VALID",
        dimension_numbers=("NCHW", "OIHW", "NCHW"))
    return out + b_pw.reshape(1, Cout, 1, 1)


if __name__ == "__main__":
    # Small shapes consistent with the module: typical ConvProjection usage
    # is kernel_size=3, stride=1, padding=1.
    B, Cin, Cout, H, W, K, P = 2, 16, 32, 16, 16, 3, 1

    key = jax.random.PRNGKey(0)
    ks = jax.random.split(key, 5)
    x = jax.random.normal(ks[0], (B, Cin, H, W), jnp.float32)
    w_dw = jax.random.normal(ks[1], (Cin, 1, K, K), jnp.float32) * 0.1
    b_dw = jax.random.normal(ks[2], (Cin,), jnp.float32) * 0.1
    w_pw = jax.random.normal(ks[3], (Cout, Cin, 1, 1), jnp.float32) * 0.1
    b_pw = jax.random.normal(ks[4], (Cout,), jnp.float32) * 0.1

    out = sepconv2d_pallas(x, w_dw, b_dw, w_pw, b_pw,
                           kernel_size=K, padding=P, stride=1, dilation=1)
    out = jax.block_until_ready(out)

    ref = sepconv2d_reference(x, w_dw, b_dw, w_pw, b_pw, padding=P)
    # tolerance accounts for the bf16 input DMA + bf16 pointwise matmul
    # (f32 accumulation everywhere)
    np.testing.assert_allclose(np.asarray(out), np.asarray(ref),
                               rtol=2e-2, atol=2e-2)
    print("KERNEL_OK")
</pallas_src>

<mosaic_0001>
module attributes {stable_mosaic.version = 11 : i64} {
  func.func @_sepconv_kernel(%arg0: i32, %arg1: i32, %arg2: memref<1x16x24x128xbf16, #tpu.memory_space<vmem>>, %arg3: memref<1x2x24x128xbf16, #tpu.memory_space<vmem>>, %arg4: memref<9x128xf32, #tpu.memory_space<vmem>>, %arg5: memref<1x128xf32, #tpu.memory_space<vmem>>, %arg6: memref<128x128xbf16, #tpu.memory_space<vmem>>, %arg7: memref<1x128xf32, #tpu.memory_space<vmem>>, %arg8: memref<1x16x16x128xf32, #tpu.memory_space<vmem>>, %arg9: memref<18x24x128xf32, #tpu.memory_space<vmem>>) attributes {dimension_semantics = [#tpu.dimension_semantics<parallel>, #tpu.dimension_semantics<parallel>], iteration_bounds = array<i64: 2, 1>, scalar_prefetch = 0 : i64, scratch_operands = 1 : i64, tpu.core_type = #tpu.core_type<tc>, window_params = [{transform_indices = @transform_0, window_bounds = array<i64: 1, 16, 24, 128>}, {transform_indices = @transform_1, window_bounds = array<i64: 1, 2, 24, 128>}, {pipeline_mode = #tpu.pipeline_mode<synchronous>, transform_indices = @transform_2, window_bounds = array<i64: 9, 128>}, {pipeline_mode = #tpu.pipeline_mode<synchronous>, transform_indices = @transform_3, window_bounds = array<i64: 1, 128>}, {pipeline_mode = #tpu.pipeline_mode<synchronous>, transform_indices = @transform_4, window_bounds = array<i64: 128, 128>}, {pipeline_mode = #tpu.pipeline_mode<synchronous>, transform_indices = @transform_5, window_bounds = array<i64: 1, 128>}, {transform_indices = @transform_6, window_bounds = array<i64: 1, 16, 16, 128>}]} {
    %c0 = arith.constant 0 : index
    %c0_0 = arith.constant 0 : index
    %c0_1 = arith.constant 0 : index
    %c0_2 = arith.constant 0 : index
    %0 = vector.load %arg2[%c0, %c0_0, %c0_1, %c0_2] : memref<1x16x24x128xbf16, #tpu.memory_space<vmem>>, vector<1x16x24x128xbf16>
    %1 = vector.shape_cast %0 : vector<1x16x24x128xbf16> to vector<16x24x128xbf16>
    %2 = arith.extf %1 : vector<16x24x128xbf16> to vector<16x24x128xf32>
    %c0_3 = arith.constant 0 : index
    %c0_4 = arith.constant 0 : index
    %c0_5 = arith.constant 0 : index
    %3 = vector.load %arg9[%c0_3, %c0_4, %c0_5] : memref<18x24x128xf32, #tpu.memory_space<vmem>>, vector<16x24x128xf32>
    tpu.vector_store %arg9[%c0_3, %c0_4, %c0_5], %2 {strides = array<i32>} : memref<18x24x128xf32, #tpu.memory_space<vmem>>, vector<16x24x128xf32>,
    %c0_6 = arith.constant 0 : index
    %c0_7 = arith.constant 0 : index
    %c0_8 = arith.constant 0 : index
    %c0_9 = arith.constant 0 : index
    %4 = vector.load %arg3[%c0_6, %c0_7, %c0_8, %c0_9] : memref<1x2x24x128xbf16, #tpu.memory_space<vmem>>, vector<1x2x24x128xbf16>
    %5 = vector.shape_cast %4 : vector<1x2x24x128xbf16> to vector<2x24x128xbf16>
    %6 = arith.extf %5 : vector<2x24x128xbf16> to vector<2x24x128xf32>
    %c16 = arith.constant 16 : index
    %c0_10 = arith.constant 0 : index
    %c0_11 = arith.constant 0 : index
    %7 = vector.load %arg9[%c16, %c0_10, %c0_11] : memref<18x24x128xf32, #tpu.memory_space<vmem>>, vector<2x24x128xf32>
    tpu.vector_store %arg9[%c16, %c0_10, %c0_11], %6 {strides = array<i32>} : memref<18x24x128xf32, #tpu.memory_space<vmem>>, vector<2x24x128xf32>,
    %c0_12 = arith.constant 0 : index
    %c0_13 = arith.constant 0 : index
    %c0_14 = arith.constant 0 : index
    %8 = vector.load %arg9[%c0_12, %c0_13, %c0_14] : memref<18x24x128xf32, #tpu.memory_space<vmem>>, vector<16x16x128xf32>
    %c0_15 = arith.constant 0 : index
    %c0_16 = arith.constant 0 : index
    %9 = vector.load %arg4[%c0_15, %c0_16] : memref<9x128xf32, #tpu.memory_space<vmem>>, vector<1x128xf32>
    %10 = vector.shape_cast %9 : vector<1x128xf32> to vector<1x1x128xf32>
    %11 = vector.broadcast %10 : vector<1x1x128xf32> to vector<16x16x128xf32>
    %12 = arith.mulf %8, %11 : vector<16x16x128xf32>
    %c0_17 = arith.constant 0 : index
    %c1 = arith.constant 1 : index
    %c0_18 = arith.constant 0 : index
    %13 = vector.load %arg9[%c0_17, %c1, %c0_18] : memref<18x24x128xf32, #tpu.memory_space<vmem>>, vector<16x16x128xf32>
    %c1_19 = arith.constant 1 : index
    %c0_20 = arith.constant 0 : index
    %14 = vector.load %arg4[%c1_19, %c0_20] : memref<9x128xf32, #tpu.memory_space<vmem>>, vector<1x128xf32>
    %15 = vector.shape_cast %14 : vector<1x128xf32> to vector<1x1x128xf32>
    %16 = vector.broadcast %15 : vector<1x1x128xf32> to vector<16x16x128xf32>
    %17 = arith.mulf %13, %16 : vector<16x16x128xf32>
    %c0_21 = arith.constant 0 : index
    %c2 = arith.constant 2 : index
    %c0_22 = arith.constant 0 : index
    %18 = vector.load %arg9[%c0_21, %c2, %c0_22] : memref<18x24x128xf32, #tpu.memory_space<vmem>>, vector<16x16x128xf32>
    %c2_23 = arith.constant 2 : index
    %c0_24 = arith.constant 0 : index
    %19 = vector.load %arg4[%c2_23, %c0_24] : memref<9x128xf32, #tpu.memory_space<vmem>>, vector<1x128xf32>
    %20 = vector.shape_cast %19 : vector<1x128xf32> to vector<1x1x128xf32>
    %21 = vector.broadcast %20 : vector<1x1x128xf32> to vector<16x16x128xf32>
    %22 = arith.mulf %18, %21 : vector<16x16x128xf32>
    %23 = arith.addf %12, %22 : vector<16x16x128xf32>
    %c1_25 = arith.constant 1 : index
    %c0_26 = arith.constant 0 : index
    %c0_27 = arith.constant 0 : index
    %24 = vector.load %arg9[%c1_25, %c0_26, %c0_27] : memref<18x24x128xf32, #tpu.memory_space<vmem>>, vector<16x16x128xf32>
    %c3 = arith.constant 3 : index
    %c0_28 = arith.constant 0 : index
    %25 = vector.load %arg4[%c3, %c0_28] : memref<9x128xf32, #tpu.memory_space<vmem>>, vector<1x128xf32>
    %26 = vector.shape_cast %25 : vector<1x128xf32> to vector<1x1x128xf32>
    %27 = vector.broadcast %26 : vector<1x1x128xf32> to vector<16x16x128xf32>
    %28 = arith.mulf %24, %27 : vector<16x16x128xf32>
    %29 = arith.addf %17, %28 : vector<16x16x128xf32>
    %c1_29 = arith.constant 1 : index
    %c1_30 = arith.constant 1 : index
    %c0_31 = arith.constant 0 : index
    %30 = vector.load %arg9[%c1_29, %c1_30, %c0_31] : memref<18x24x128xf32, #tpu.memory_space<vmem>>, vector<16x16x128xf32>
    %c4 = arith.constant 4 : index
    %c0_32 = arith.constant 0 : index
    %31 = vector.load %arg4[%c4, %c0_32] : memref<9x128xf32, #tpu.memory_space<vmem>>, vector<1x128xf32>
    %32 = vector.shape_cast %31 : vector<1x128xf32> to vector<1x1x128xf32>
    %33 = vector.broadcast %32 : vector<1x1x128xf32> to vector<16x16x128xf32>
    %34 = arith.mulf %30, %33 : vector<16x16x128xf32>
    %35 = arith.addf %23, %34 : vector<16x16x128xf32>
    %c1_33 = arith.constant 1 : index
    %c2_34 = arith.constant 2 : index
    %c0_35 = arith.constant 0 : index
    %36 = vector.load %arg9[%c1_33, %c2_34, %c0_35] : memref<18x24x128xf32, #tpu.memory_space<vmem>>, vector<16x16x128xf32>
    %c5 = arith.constant 5 : index
    %c0_36 = arith.constant 0 : index
    %37 = vector.load %arg4[%c5, %c0_36] : memref<9x128xf32, #tpu.memory_space<vmem>>, vector<1x128xf32>
    %38 = vector.shape_cast %37 : vector<1x128xf32> to vector<1x1x128xf32>
    %39 = vector.broadcast %38 : vector<1x1x128xf32> to vector<16x16x128xf32>
    %40 = arith.mulf %36, %39 : vector<16x16x128xf32>
    %41 = arith.addf %29, %40 : vector<16x16x128xf32>
    %c2_37 = arith.constant 2 : index
    %c0_38 = arith.constant 0 : index
    %c0_39 = arith.constant 0 : index
    %42 = vector.load %arg9[%c2_37, %c0_38, %c0_39] : memref<18x24x128xf32, #tpu.memory_space<vmem>>, vector<16x16x128xf32>
    %c6 = arith.constant 6 : index
    %c0_40 = arith.constant 0 : index
    %43 = vector.load %arg4[%c6, %c0_40] : memref<9x128xf32, #tpu.memory_space<vmem>>, vector<1x128xf32>
    %44 = vector.shape_cast %43 : vector<1x128xf32> to vector<1x1x128xf32>
    %45 = vector.broadcast %44 : vector<1x1x128xf32> to vector<16x16x128xf32>
    %46 = arith.mulf %42, %45 : vector<16x16x128xf32>
    %47 = arith.addf %35, %46 : vector<16x16x128xf32>
    %c2_41 = arith.constant 2 : index
    %c1_42 = arith.constant 1 : index
    %c0_43 = arith.constant 0 : index
    %48 = vector.load %arg9[%c2_41, %c1_42, %c0_43] : memref<18x24x128xf32, #tpu.memory_space<vmem>>, vector<16x16x128xf32>
    %c7 = arith.constant 7 : index
    %c0_44 = arith.constant 0 : index
    %49 = vector.load %arg4[%c7, %c0_44] : memref<9x128xf32, #tpu.memory_space<vmem>>, vector<1x128xf32>
    %50 = vector.shape_cast %49 : vector<1x128xf32> to vector<1x1x128xf32>
    %51 = vector.broadcast %50 : vector<1x1x128xf32> to vector<16x16x128xf32>
    %52 = arith.mulf %48, %51 : vector<16x16x128xf32>
    %53 = arith.addf %41, %52 : vector<16x16x128xf32>
    %c2_45 = arith.constant 2 : index
    %c2_46 = arith.constant 2 : index
    %c0_47 = arith.constant 0 : index
    %54 = vector.load %arg9[%c2_45, %c2_46, %c0_47] : memref<18x24x128xf32, #tpu.memory_space<vmem>>, vector<16x16x128xf32>
    %c8 = arith.constant 8 : index
    %c0_48 = arith.constant 0 : index
    %55 = vector.load %arg4[%c8, %c0_48] : memref<9x128xf32, #tpu.memory_space<vmem>>, vector<1x128xf32>
    %56 = vector.shape_cast %55 : vector<1x128xf32> to vector<1x1x128xf32>
    %57 = vector.broadcast %56 : vector<1x1x128xf32> to vector<16x16x128xf32>
    %58 = arith.mulf %54, %57 : vector<16x16x128xf32>
    %59 = arith.addf %47, %58 : vector<16x16x128xf32>
    %60 = arith.addf %59, %53 : vector<16x16x128xf32>
    %c0_49 = arith.constant 0 : index
    %c0_50 = arith.constant 0 : index
    %61 = vector.load %arg5[%c0_49, %c0_50] : memref<1x128xf32, #tpu.memory_space<vmem>>, vector<1x128xf32>
    %62 = vector.shape_cast %61 : vector<1x128xf32> to vector<1x1x128xf32>
    %63 = vector.broadcast %62 : vector<1x1x128xf32> to vector<16x16x128xf32>
    %64 = arith.addf %60, %63 : vector<16x16x128xf32>
    %cst = arith.constant 0.000000e+00 : f32
    %65 = vector.broadcast %cst : f32 to vector<16x16x128xf32>
    %66 = arith.maximumf %64, %65 : vector<16x16x128xf32>
    %67 = vector.shape_cast %66 : vector<16x16x128xf32> to vector<256x128xf32>
    %68 = arith.truncf %67 : vector<256x128xf32> to vector<256x128xbf16>
    %c0_51 = arith.constant 0 : index
    %c0_52 = arith.constant 0 : index
    %69 = vector.load %arg6[%c0_51, %c0_52] : memref<128x128xbf16, #tpu.memory_space<vmem>>, vector<128x128xbf16>
    %cst_53 = arith.constant dense<0.000000e+00> : vector<256x128xf32>
    %70 = tpu.matmul %68, %69, %cst_53 {dimension_numbers = #tpu.dot_dimension_numbers<[1], [0], [0], [1], [0, 0, 1, 1], [], []>} : vector<256x128xbf16>, vector<128x128xbf16>, vector<256x128xf32> -> vector<256x128xf32>
    %c0_54 = arith.constant 0 : index
    %c0_55 = arith.constant 0 : index
    %71 = vector.load %arg7[%c0_54, %c0_55] : memref<1x128xf32, #tpu.memory_space<vmem>>, vector<1x128xf32>
    %72 = vector.broadcast %71 : vector<1x128xf32> to vector<256x128xf32>
    %73 = arith.addf %70, %72 : vector<256x128xf32>
    %74 = vector.shape_cast %73 : vector<256x128xf32> to vector<16x16x128xf32>
    %c0_56 = arith.constant 0 : index
    %c0_57 = arith.constant 0 : index
    %c0_58 = arith.constant 0 : index
    %c0_59 = arith.constant 0 : index
    %75 = vector.load %arg8[%c0_56, %c0_57, %c0_58, %c0_59] : memref<1x16x16x128xf32, #tpu.memory_space<vmem>>, vector<1x16x16x128xf32>
    %76 = vector.shape_cast %75 : vector<1x16x16x128xf32> to vector<16x16x128xf32>
    %77 = vector.shape_cast %74 : vector<16x16x128xf32> to vector<1x16x16x128xf32>
    tpu.vector_store %arg8[%c0_56, %c0_57, %c0_58, %c0_59], %77 {strides = array<i32>} : memref<1x16x16x128xf32, #tpu.memory_space<vmem>>, vector<1x16x16x128xf32>,
    return
  }
  func.func @transform_0(%arg0: i32, %arg1: i32) -> (i32, i32, i32, i32) {
    %c0_i32 = arith.constant 0 : i32
    %c0_i32_0 = arith.constant 0 : i32
    %c0_i32_1 = arith.constant 0 : i32
    return %arg0, %arg1, %c0_i32, %c0_i32_0 : i32, i32, i32, i32
  }
  func.func @transform_1(%arg0: i32, %arg1: i32) -> (i32, i32, i32, i32) {
    %c1_i32 = arith.constant 1 : i32
    %0 = arith.addi %arg1, %c1_i32 : i32
    %c8_i32 = arith.constant 8 : i32
    %1 = arith.muli %0, %c8_i32 : i32
    %c0_i32 = arith.constant 0 : i32
    %c0_i32_0 = arith.constant 0 : i32
    %c0_i32_1 = arith.constant 0 : i32
    return %arg0, %1, %c0_i32, %c0_i32_0 : i32, i32, i32, i32
  }
  func.func @transform_2(%arg0: i32, %arg1: i32) -> (i32, i32) {
    %c0_i32 = arith.constant 0 : i32
    %c0_i32_0 = arith.constant 0 : i32
    %c0_i32_1 = arith.constant 0 : i32
    return %c0_i32, %c0_i32_0 : i32, i32
  }
  func.func @transform_3(%arg0: i32, %arg1: i32) -> (i32, i32) {
    %c0_i32 = arith.constant 0 : i32
    %c0_i32_0 = arith.constant 0 : i32
    %c0_i32_1 = arith.constant 0 : i32
    return %c0_i32, %c0_i32_0 : i32, i32
  }
  func.func @transform_4(%arg0: i32, %arg1: i32) -> (i32, i32) {
    %c0_i32 = arith.constant 0 : i32
    %c0_i32_0 = arith.constant 0 : i32
    %c0_i32_1 = arith.constant 0 : i32
    return %c0_i32, %c0_i32_0 : i32, i32
  }
  func.func @transform_5(%arg0: i32, %arg1: i32) -> (i32, i32) {
    %c0_i32 = arith.constant 0 : i32
    %c0_i32_0 = arith.constant 0 : i32
    %c0_i32_1 = arith.constant 0 : i32
    return %c0_i32, %c0_i32_0 : i32, i32
  }
  func.func @transform_6(%arg0: i32, %arg1: i32) -> (i32, i32, i32, i32) {
    %c0_i32 = arith.constant 0 : i32
    %c0_i32_0 = arith.constant 0 : i32
    %c0_i32_1 = arith.constant 0 : i32
    return %arg0, %arg1, %c0_i32, %c0_i32_0 : i32, i32, i32, i32
  }
}

</mosaic_0001>

<llo_original>
// kernel: tpu_custom_call.1
$region0: #{tpu_custom_call.1}
  #allocation0 [shape = 'u32[]', space=smem, size = 0x4, offset = 0x4, fixed_abs, tag = 'smem constant byte address 0x4 - core index']
  #allocation1 [shape = 'u32[144,128]{1,0:T(1,128)}', space=vmem, size = 0x12000, scoped, tag = 'internal scratch']
  #allocation2 [shape = 'f32[18,24,128]{2,1,0:T(8,128)}', space=vmem, size = 0x36000, scoped, tag = 'scratch operand']
  %s0 = inlined_call_operand.hbm [shape: bf16[2,18,24,128], index: 0, kind: input, shape index: {}]
  %s1 = inlined_call_operand.hbm [shape: bf16[2,18,24,128], index: 1, kind: input, shape index: {}]
  %s2 = inlined_call_operand.hbm [shape: f32[9,128], index: 2, kind: input, shape index: {}]
  %s3 = inlined_call_operand.vmem [shape: f32[1,128], index: 3, kind: input, shape index: {}]
  %s4 = inlined_call_operand.hbm [shape: bf16[128,128], index: 4, kind: input, shape index: {}]
  %s5 = inlined_call_operand.vmem [shape: f32[1,128], index: 5, kind: input, shape index: {}]
  %s6 = inlined_call_operand.hbm [shape: f32[2,16,16,128], index: 6, kind: output, shape index: {}]
  %s7 = sld [smem:[#allocation0]]
  $region73: #{tpu_custom_call.1} parent=0
    _
  %s9 = ssub.s32 1, %s7
  %s10 = scalar_select 0, %s9, %s7
  $region1: #{tpu_custom_call.1} parent=0
    #allocation3 [shape = 'u8[196608]{0}', space=vmem, size = 0x30000, scoped, tag = 'input window, operand 0']
    #allocation4 [shape = 's32[2]{0}', space=sflag, size = 0x8, scoped, tag = 'scoped memory for tpu_custom_call.1']
    #allocation5 [shape = 's32[2]{0}', space=sflag, size = 0x8, scoped, tag = 'scoped memory for tpu_custom_call.1']
    #allocation6 [shape = 'u8[24576]{0}', space=vmem, size = 0x6000, scoped, tag = 'input window, operand 1']
    #allocation7 [shape = 's32[2]{0}', space=sflag, size = 0x8, scoped, tag = 'scoped memory for tpu_custom_call.1']
    #allocation8 [shape = 'u8[8192]{0}', space=vmem, size = 0x2000, scoped, tag = 'input window, operand 2, single buffered']
    #allocation9 [shape = 'u8[32768]{0}', space=vmem, size = 0x8000, scoped, tag = 'input window, operand 4, single buffered']
    #allocation10 [shape = 's32[1]{0}', space=sflag, size = 0x4, scoped, tag = 'scoped memory for tpu_custom_call.1']
    #allocation11 [shape = 'u8[262144]{0}', space=vmem, size = 0x40000, scoped, tag = 'output window, operand 0']
    %11 = vsyncpa [#allocation4], 0
    %s12 = scalar_lea.sflag [#allocation4], 1
    %13 = vsyncpa %s12, 0
    %14 = vsyncpa [#allocation7], 0
    %s15 = scalar_lea.sflag [#allocation7], 1
    %16 = vsyncpa %s15, 0
    %17 = vsyncpa [#allocation10], 0
    %18 = vsyncpa [#allocation5], 0
    %s19 = scalar_lea.sflag [#allocation5], 1
    %20 = vsyncpa %s19, 0
    loop: start=0, step=1, limit=4
    $region2: #{tpu_custom_call.1} parent=1 // loop_pre_header
      _
    $region3: #{tpu_custom_call.1} parent=1 // loop_header
      %s22 = sphi 0, %s26
      %p23 = scmp.ge.s32.totalorder %s22, 4
      %s29 = sphi 0, %s41
      %s30 = sphi 0, %s37
      %s31 = sphi 0, %s29
      %s32 = sphi 0, %s30
      %s33 = sphi 0, %s31
      %s34 = sphi 0, %s32
      %s46 = sphi 0, %s48
      %s49 = sphi 0, %s46
      %s50 = sphi 0, %s49
      %s66 = sphi 0, %s50
      %s78 = sphi 0, %s80
      %s81 = sphi 0, %s78
      %s82 = sphi 0, %s81
      %s98 = sphi 0, %s82
      %s102 = sphi 0, %s102
      %s104 = sphi 0, %s102
      %s105 = sphi 0, %s104
      %s119 = sphi 0, %s105
      %s123 = sphi 0, %s123
      %s125 = sphi 0, %s123
      %s126 = sphi 0, %s125
      %s140 = sphi 0, %s126
      %s144 = sphi 0, %s144
      %s146 = sphi 0, %s144
      %s147 = sphi 0, %s146
      %s161 = sphi 0, %s147
      %s165 = sphi 0, %s165
      %s167 = sphi 0, %s165
      %s168 = sphi 0, %s167
      %s182 = sphi 0, %s168
      %s190 = sphi 0, %s192
      %s193 = sphi 0, %s190
      %s194 = sphi 0, %s193
      %s210 = sphi 0, %s194
    $region4: #{tpu_custom_call.1} parent=1 // loop_header_branch
      %25 = sbr.rel (%p23) target = $region8
    $region5: #{tpu_custom_call.1} parent=1 // loop_body
      %s27 = ssub.s32 %s22, 1
      %s28 = ssub.s32 %s22, 2
      %s35 = sadd.s32 1, %s30
      %p36 = scmp.ge.s32.totalorder %s35, 1
      %s37 = scalar_select %p36, 0, %s35
      %s38 = sadd.s32 1, %s29
      %s39 = scalar_select %p36, %s38, %s29
      %p40 = scmp.ge.s32.totalorder %s39, 2
      %s41 = scalar_select %p40, 0, %s39
      %s42 = ssub.s32 %s29, %s41
      %s43 = ssub.s32 %s30, %s37
      %s44 = sor.u32 %s42, %s43
      %p45 = scmp.eq.s32.totalorder %s44, 0
      %s47 = sadd.s32 %s46, 1
      %s48 = scalar_select %p45, %s46, %s47
      %p51 = pneg %p45
      %p52 = scmp.eq.s32.totalorder %s22, 1
      %p53 = por %p51, %p52
      %p54 = scmp.ne.s32.totalorder %s46, %s49
      %p55 = scmp.eq.s32.totalorder %s22, 0
      %p56 = por %p54, %p55
      %p57 = scmp.ne.s32.totalorder %s46, %s49
      %p58 = scmp.eq.s32.totalorder %s27, 1
      %p59 = por %p57, %p58
      %p60 = scmp.ne.s32.totalorder %s49, %s50
      %p61 = scmp.eq.s32.totalorder %s27, 0
      %p62 = por %p60, %p61
      %p63 = scmp.ne.s32.totalorder %s49, %s50
      %p64 = scmp.eq.s32.totalorder %s28, 1
      %p65 = por %p63, %p64
      %p67 = scmp.ne.s32.totalorder %s50, %s66
      %p68 = scmp.eq.s32.totalorder %s28, 0
      %p69 = por %p67, %p68
      %s70 = sadd.s32 %s30, 1
      %s71 = smul.u32 %s70, 8
      %s72 = sadd.s32 %s37, 1
      %s73 = smul.u32 %s72, 8
      %s74 = ssub.s32 %s29, %s41
      %s75 = ssub.s32 %s71, %s73
      %s76 = sor.u32 %s74, %s75
      %p77 = scmp.eq.s32.totalorder %s76, 0
      %s79 = sadd.s32 %s78, 1
      %s80 = scalar_select %p77, %s78, %s79
      %p83 = pneg %p77
      %p84 = scmp.eq.s32.totalorder %s22, 1
      %p85 = por %p83, %p84
      %p86 = scmp.ne.s32.totalorder %s78, %s81
      %p87 = scmp.eq.s32.totalorder %s22, 0
      %p88 = por %p86, %p87
      %p89 = scmp.ne.s32.totalorder %s78, %s81
      %p90 = scmp.eq.s32.totalorder %s27, 1
      %p91 = por %p89, %p90
      %p92 = scmp.ne.s32.totalorder %s81, %s82
      %p93 = scmp.eq.s32.totalorder %s27, 0
      %p94 = por %p92, %p93
      %p95 = scmp.ne.s32.totalorder %s81, %s82
      %p96 = scmp.eq.s32.totalorder %s28, 1
      %p97 = por %p95, %p96
      %p99 = scmp.ne.s32.totalorder %s82, %s98
      %p100 = scmp.eq.s32.totalorder %s28, 0
      %p101 = por %p99, %p100
      %s103 = sadd.s32 %s102, 1
      %p106 = scmp.eq.s32.totalorder %s22, 1
      %p107 = scmp.ne.s32.totalorder %s102, %s104
      %p108 = scmp.eq.s32.totalorder %s22, 0
      %p109 = por %p107, %p108
      %p110 = scmp.ne.s32.totalorder %s102, %s104
      %p111 = scmp.eq.s32.totalorder %s27, 1
      %p112 = por %p110, %p111
      %p113 = scmp.ne.s32.totalorder %s104, %s105
      %p114 = scmp.eq.s32.totalorder %s27, 0
      %p115 = por %p113, %p114
      %p116 = scmp.ne.s32.totalorder %s104, %s105
      %p117 = scmp.eq.s32.totalorder %s28, 1
      %p118 = por %p116, %p117
      %p120 = scmp.ne.s32.totalorder %s105, %s119
      %p121 = scmp.eq.s32.totalorder %s28, 0
      %p122 = por %p120, %p121
      %s124 = sadd.s32 %s123, 1
      %p127 = scmp.eq.s32.totalorder %s22, 1
      %p128 = scmp.ne.s32.totalorder %s123, %s125
      %p129 = scmp.eq.s32.totalorder %s22, 0
      %p130 = por %p128, %p129
      %p131 = scmp.ne.s32.totalorder %s123, %s125
      %p132 = scmp.eq.s32.totalorder %s27, 1
      %p133 = por %p131, %p132
      %p134 = scmp.ne.s32.totalorder %s125, %s126
      %p135 = scmp.eq.s32.totalorder %s27, 0
      %p136 = por %p134, %p135
      %p137 = scmp.ne.s32.totalorder %s125, %s126
      %p138 = scmp.eq.s32.totalorder %s28, 1
      %p139 = por %p137, %p138
      %p141 = scmp.ne.s32.totalorder %s126, %s140
      %p142 = scmp.eq.s32.totalorder %s28, 0
      %p143 = por %p141, %p142
      %s145 = sadd.s32 %s144, 1
      %p148 = scmp.eq.s32.totalorder %s22, 1
      %p149 = scmp.ne.s32.totalorder %s144, %s146
      %p150 = scmp.eq.s32.totalorder %s22, 0
      %p151 = por %p149, %p150
      %p152 = scmp.ne.s32.totalorder %s144, %s146
      %p153 = scmp.eq.s32.totalorder %s27, 1
      %p154 = por %p152, %p153
      %p155 = scmp.ne.s32.totalorder %s146, %s147
      %p156 = scmp.eq.s32.totalorder %s27, 0
      %p157 = por %p155, %p156
      %p158 = scmp.ne.s32.totalorder %s146, %s147
      %p159 = scmp.eq.s32.totalorder %s28, 1
      %p160 = por %p158, %p159
      %p162 = scmp.ne.s32.totalorder %s147, %s161
      %p163 = scmp.eq.s32.totalorder %s28, 0
      %p164 = por %p162, %p163
      %s166 = sadd.s32 %s165, 1
      %p169 = scmp.eq.s32.totalorder %s22, 1
      %p170 = scmp.ne.s32.totalorder %s165, %s167
      %p171 = scmp.eq.s32.totalorder %s22, 0
      %p172 = por %p170, %p171
      %p173 = scmp.ne.s32.totalorder %s165, %s167
      %p174 = scmp.eq.s32.totalorder %s27, 1
      %p175 = por %p173, %p174
      %p176 = scmp.ne.s32.totalorder %s167, %s168
      %p177 = scmp.eq.s32.totalorder %s27, 0
      %p178 = por %p176, %p177
      %p179 = scmp.ne.s32.totalorder %s167, %s168
      %p180 = scmp.eq.s32.totalorder %s28, 1
      %p181 = por %p179, %p180
      %p183 = scmp.ne.s32.totalorder %s168, %s182
      %p184 = scmp.eq.s32.totalorder %s28, 0
      %p185 = por %p183, %p184
      %s186 = ssub.s32 %s29, %s41
      %s187 = ssub.s32 %s30, %s37
      %s188 = sor.u32 %s186, %s187
      %p189 = scmp.eq.s32.totalorder %s188, 0
      %s191 = sadd.s32 %s190, 1
      %s192 = scalar_select %p189, %s190, %s191
      %p195 = pneg %p189
      %p196 = scmp.eq.s32.totalorder %s22, 1
      %p197 = por %p195, %p196
      %p198 = scmp.ne.s32.totalorder %s190, %s193
      %p199 = scmp.eq.s32.totalorder %s22, 0
      %p200 = por %p198, %p199
      %p201 = scmp.ne.s32.totalorder %s190, %s193
      %p202 = scmp.eq.s32.totalorder %s27, 1
      %p203 = por %p201, %p202
      %p204 = scmp.ne.s32.totalorder %s193, %s194
      %p205 = scmp.eq.s32.totalorder %s27, 0
      %p206 = por %p204, %p205
      %p207 = scmp.ne.s32.totalorder %s193, %s194
      %p208 = scmp.eq.s32.totalorder %s28, 1
      %p209 = por %p207, %p208
      %p211 = scmp.ne.s32.totalorder %s194, %s210
      %p212 = scmp.eq.s32.totalorder %s28, 0
      %p213 = por %p211, %p212
      %p214 = scmp.le.s32.totalorder 1, %s22
      %p215 = scmp.lt.s32.totalorder %s22, 3
      %p216 = pnand %p214, %p215
      %p217 = pneg %p216
      // Predicated region
      $region9: #{tpu_custom_call.1} parent=5 // pred_check
        _
      $region10: #{tpu_custom_call.1} parent=5 // pred_check_branch
        %219 = sbr.rel (%p216) target = $region12
      $region11: #{tpu_custom_call.1} parent=5 // pred_region
        %s220 = ssub.s32 %s22, 1
        // Predicated region
        $region13: #{tpu_custom_call.1} parent=11 // pred_check
          %p221 = pneg %p115
        $region14: #{tpu_custom_call.1} parent=11 // pred_check_branch
          %223 = sbr.rel (%p221) target = $region16
        $region15: #{tpu_custom_call.1} parent=11 // pred_region
          %s225 = ssub.s32 256, 256
          %226 = vsyncadd [#allocation7], %s225
          %s227 = sshll.u32 [#allocation8], 4
          %s228 = int_to_ptr.vmem [resolvable:$true] %s227
          %233 = dma.hbm_to_vmem [thread:$0]  %s2, 256, %s228, [#allocation7], 128, 128, 8
        $region16: #{tpu_custom_call.1} parent=11 // pred_fallthru
          _
        // Predicated region
        $region17: #{tpu_custom_call.1} parent=11 // pred_check
          %p234 = pneg %p136
        $region18: #{tpu_custom_call.1} parent=11 // pred_check_branch
          %236 = sbr.rel (%p234) target = $region20
        $region19: #{tpu_custom_call.1} parent=11 // pred_region
          _
        $region20: #{tpu_custom_call.1} parent=11 // pred_fallthru
          _
        // Predicated region
        $region21: #{tpu_custom_call.1} parent=11 // pred_check
          %p237 = pneg %p157
        $region22: #{tpu_custom_call.1} parent=11 // pred_check_branch
          %239 = sbr.rel (%p237) target = $region24
        $region23: #{tpu_custom_call.1} parent=11 // pred_region
          %s241 = ssub.s32 1024, 1024
          %242 = vsyncadd [#allocation10], %s241
          %s243 = sshll.u32 [#allocation9], 4
          %s244 = int_to_ptr.vmem [resolvable:$true] %s243
          %249 = dma.hbm_to_vmem [thread:$0]  %s4, 1024, %s244, [#allocation10], 64, 64, 4
        $region24: #{tpu_custom_call.1} parent=11 // pred_fallthru
          _
        // Predicated region
        $region25: #{tpu_custom_call.1} parent=11 // pred_check
          %p250 = pneg %p178
        $region26: #{tpu_custom_call.1} parent=11 // pred_check_branch
          %252 = sbr.rel (%p250) target = $region28
        $region27: #{tpu_custom_call.1} parent=11 // pred_region
          _
        $region28: #{tpu_custom_call.1} parent=11 // pred_fallthru
          _
      $region12: #{tpu_custom_call.1} parent=5 // pred_fallthru
        _
      %p253 = scmp.lt.s32.totalorder %s22, 2
      // Predicated region
      $region29: #{tpu_custom_call.1} parent=5 // pred_check
        %p254 = pneg %p253
      $region30: #{tpu_custom_call.1} parent=5 // pred_check_branch
        %256 = sbr.rel (%p254) target = $region32
      $region31: #{tpu_custom_call.1} parent=5 // pred_region
        // Predicated region
        $region33: #{tpu_custom_call.1} parent=31 // pred_check
          %p257 = pneg %p56
        $region34: #{tpu_custom_call.1} parent=31 // pred_check_branch
          %259 = sbr.rel (%p257) target = $region36
        $region35: #{tpu_custom_call.1} parent=31 // pred_region
          %s260 = sand.u32 %s46, 1
          %s261 = scalar_lea.sflag [#allocation4], %s260
          %s262 = sand.u32 %s46, 1
          %s263 = smul.addr %s262, 192
          %s264 = scalar_lea.vmem [#allocation3], %s263
          %s265 = smul.u32 16, %s30
          %s266 = ssub.s32 18, %s265
          %p267 = scmp.lt.s32.totalorder %s266, 16
          %s268 = scalar_select %p267, %s266, 16
          %s269 = smul.u32 64, %s268
          %s270 = smul.u32 %s269, 3
          %s272 = ssub.s32 3072, %s270
          %273 = vsyncadd %s261, %s272
          %p274 = scmp.ne.s32.totalorder 0, %s270
          %s275 = smul.addr %s265, 3
          %s276 = smul.addr %s29, 54
          %s277 = sadd.s32 %s275, %s276
          %s278 = smul.addr %s277, 64
          %s279 = scalar_lea.hbm %s0, %s278
          %s280 = smul.u32 %s268, 3
          %s281 = smul.u32 4, %s280
          %s282 = sshll.u32 %s264, 4
          %s283 = int_to_ptr.vmem [resolvable:$true] %s282
          %s284 = sshll.u32 %s281, 4
          %288 = dma.hbm_to_vmem [thread:$0]  (%p274), %s279, %s284, %s283, %s261, 64, 64, 4
        $region36: #{tpu_custom_call.1} parent=31 // pred_fallthru
          _
        // Predicated region
        $region37: #{tpu_custom_call.1} parent=31 // pred_check
          %p289 = pneg %p88
        $region38: #{tpu_custom_call.1} parent=31 // pred_check_branch
          %291 = sbr.rel (%p289) target = $region40
        $region39: #{tpu_custom_call.1} parent=31 // pred_region
          %s292 = sand.u32 %s22, 1
          %s293 = scalar_lea.sflag [#allocation7], %s292
          %s294 = sand.u32 %s78, 1
          %s295 = smul.addr %s294, 24
          %s296 = scalar_lea.vmem [#allocation6], %s295
          %s297 = sadd.s32 %s30, 1
          %s298 = smul.u32 %s297, 8
          %s299 = smul.u32 2, %s298
          %s301 = ssub.s32 384, 384
          %302 = vsyncadd %s293, %s301
          %s303 = smul.addr %s299, 3
          %s304 = smul.addr %s29, 54
          %s305 = sadd.s32 %s303, %s304
          %s306 = smul.addr %s305, 64
          %s307 = scalar_lea.hbm %s1, %s306
          %s308 = sshll.u32 %s296, 4
          %s309 = int_to_ptr.vmem [resolvable:$true] %s308
          %314 = dma.hbm_to_vmem [thread:$0]  %s307, 384, %s309, %s293, 64, 64, 4
        $region40: #{tpu_custom_call.1} parent=31 // pred_fallthru
          _
      $region32: #{tpu_custom_call.1} parent=5 // pred_fallthru
        _
      %p315 = scmp.le.s32.totalorder 1, %s22
      %p316 = scmp.lt.s32.totalorder %s22, 3
      %p317 = pnand %p315, %p316
      %p318 = pneg %p317
      // Predicated region
      $region41: #{tpu_custom_call.1} parent=5 // pred_check
        _
      $region42: #{tpu_custom_call.1} parent=5 // pred_check_branch
        %320 = sbr.rel (%p317) target = $region44
      $region43: #{tpu_custom_call.1} parent=5 // pred_region
        %s321 = ssub.s32 %s22, 1
        %s322 = sand.u32 %s49, 1
        %s323 = scalar_lea.sflag [#allocation4], %s322
        %s324 = sand.u32 %s49, 1
        %s325 = smul.addr %s324, 192
        %s326 = scalar_lea.vmem [#allocation3], %s325
        // Predicated region
        $region45: #{tpu_custom_call.1} parent=43 // pred_check
          %p327 = pneg %p62
        $region46: #{tpu_custom_call.1} parent=43 // pred_check_branch
          %329 = sbr.rel (%p327) target = $region48
        $region47: #{tpu_custom_call.1} parent=43 // pred_region
          %330 = dma.done %s323, 3072
        $region48: #{tpu_custom_call.1} parent=43 // pred_fallthru
          _
        %s331 = sand.u32 %s27, 1
        %s332 = scalar_lea.sflag [#allocation7], %s331
        %s333 = sand.u32 %s81, 1
        %s334 = smul.addr %s333, 24
        %s335 = scalar_lea.vmem [#allocation6], %s334
        // Predicated region
        $region49: #{tpu_custom_call.1} parent=43 // pred_check
          %p336 = pneg %p94
        $region50: #{tpu_custom_call.1} parent=43 // pred_check_branch
          %338 = sbr.rel (%p336) target = $region52
        $region51: #{tpu_custom_call.1} parent=43 // pred_region
          %339 = dma.done %s332, 384
        $region52: #{tpu_custom_call.1} parent=43 // pred_fallthru
          _
        // Predicated region
        $region53: #{tpu_custom_call.1} parent=43 // pred_check
          %p340 = pneg %p115
        $region54: #{tpu_custom_call.1} parent=43 // pred_check_branch
          %342 = sbr.rel (%p340) target = $region56
        $region55: #{tpu_custom_call.1} parent=43 // pred_region
          %343 = dma.done [#allocation7], 256
        $region56: #{tpu_custom_call.1} parent=43 // pred_fallthru
          _
        // Predicated region
        $region57: #{tpu_custom_call.1} parent=43 // pred_check
          %p344 = pneg %p157
        $region58: #{tpu_custom_call.1} parent=43 // pred_check_branch
          %346 = sbr.rel (%p344) target = $region60
        $region59: #{tpu_custom_call.1} parent=43 // pred_region
          %347 = dma.done [#allocation10], 1024
        $region60: #{tpu_custom_call.1} parent=43 // pred_fallthru
          _
        %s348 = sand.u32 %s49, 1
        %s349 = scalar_lea.sflag [#allocation4], %s348
        %s350 = sand.u32 %s49, 1
        %s351 = smul.addr %s350, 192
        %s352 = scalar_lea.vmem [#allocation3], %s351
        %p353 = pneg %p62
        %p354 = pneg %p59
        %s355 = sand.u32 %s27, 1
        %s356 = scalar_lea.sflag [#allocation7], %s355
        %s357 = sand.u32 %s81, 1
        %s358 = smul.addr %s357, 24
        %s359 = scalar_lea.vmem [#allocation6], %s358
        %p360 = pneg %p94
        %p361 = pneg %p91
        %p362 = pneg %p115
        %p363 = pneg %p112
        %p364 = pneg %p136
        %p365 = pneg %p133
        %p366 = pneg %p157
        %p367 = pneg %p154
        %p368 = pneg %p178
        %p369 = pneg %p175
        %p370 = pneg %p206
        %p371 = pneg %p203
        %s372 = sand.u32 %s193, 1
        %s373 = scalar_lea.sflag [#allocation5], %s372
        %s374 = sand.u32 %s193, 1
        %s375 = smul.addr %s374, 256
        %s376 = scalar_lea.vmem [#allocation11], %s375
        %s377 = smul.u32 16, %s32
        %s378 = ssub.s32 18, %s377
        %p379 = scmp.lt.s32.totalorder %s378, 16
        %s380 = scalar_select %p379, %s378, 16
        %s381 = smul.u32 64, %s380
        %s382 = smul.u32 %s381, 3
        %s383 = sadd.s32 %s32, 1
        %s384 = smul.u32 %s383, 8
        %s385 = smul.u32 2, %s384
        %s386 = smul.u32 16, %s32
        %v388 = vld [vmem:[%s326] sm:$0xf]
        %v389 = vld [vmem:[%s326 + $0x4] sm:$0xf]
        %v390 = vld [vmem:[%s326 + $0x8] sm:$0xf]
        %v391 = vld [vmem:[%s326 + $0xc] sm:$0xf]
        %v392 = vld [vmem:[%s326 + $0x10] sm:$0xf]
        %v393 = vld [vmem:[%s326 + $0x14] sm:$0xf]
        %v394 = vld [vmem:[%s326 + $0x18] sm:$0xf]
        %v395 = vld [vmem:[%s326 + $0x1c] sm:$0xf]
        %v396 = vld [vmem:[%s326 + $0x20] sm:$0xf]
        %v397 = vld [vmem:[%s326 + $0x24] sm:$0xf]
        %v398 = vld [vmem:[%s326 + $0x28] sm:$0xf]
        %v399 = vld [vmem:[%s326 + $0x2c] sm:$0xf]
        %v400 = vld [vmem:[%s326 + $0x30] sm:$0xf]
        %v401 = vld [vmem:[%s326 + $0x34] sm:$0xf]
        %v402 = vld [vmem:[%s326 + $0x38] sm:$0xf]
        %v403 = vld [vmem:[%s326 + $0x3c] sm:$0xf]
        %v404 = vld [vmem:[%s326 + $0x40] sm:$0xf]
        %v405 = vld [vmem:[%s326 + $0x44] sm:$0xf]
        %v406 = vld [vmem:[%s326 + $0x48] sm:$0xf]
        %v407 = vld [vmem:[%s326 + $0x4c] sm:$0xf]
        %v408 = vld [vmem:[%s326 + $0x50] sm:$0xf]
        %v409 = vld [vmem:[%s326 + $0x54] sm:$0xf]
        %v410 = vld [vmem:[%s326 + $0x58] sm:$0xf]
        %v411 = vld [vmem:[%s326 + $0x5c] sm:$0xf]
        %v412 = vld [vmem:[%s326 + $0x60] sm:$0xf]
        %v413 = vld [vmem:[%s326 + $0x64] sm:$0xf]
        %v414 = vld [vmem:[%s326 + $0x68] sm:$0xf]
        %v415 = vld [vmem:[%s326 + $0x6c] sm:$0xf]
        %v416 = vld [vmem:[%s326 + $0x70] sm:$0xf]
        %v417 = vld [vmem:[%s326 + $0x74] sm:$0xf]
        %v418 = vld [vmem:[%s326 + $0x78] sm:$0xf]
        %v419 = vld [vmem:[%s326 + $0x7c] sm:$0xf]
        %v420 = vld [vmem:[%s326 + $0x80] sm:$0xf]
        %v421 = vld [vmem:[%s326 + $0x84] sm:$0xf]
        %v422 = vld [vmem:[%s326 + $0x88] sm:$0xf]
        %v423 = vld [vmem:[%s326 + $0x8c] sm:$0xf]
        %v424 = vld [vmem:[%s326 + $0x90] sm:$0xf]
        %v425 = vld [vmem:[%s326 + $0x94] sm:$0xf]
        %v426 = vld [vmem:[%s326 + $0x98] sm:$0xf]
        %v427 = vld [vmem:[%s326 + $0x9c] sm:$0xf]
        %v428 = vld [vmem:[%s326 + $0xa0] sm:$0xf]
        %v429 = vld [vmem:[%s326 + $0xa4] sm:$0xf]
        %v430 = vld [vmem:[%s326 + $0xa8] sm:$0xf]
        %v431 = vld [vmem:[%s326 + $0xac] sm:$0xf]
        %v432 = vld [vmem:[%s326 + $0xb0] sm:$0xf]
        %v433 = vld [vmem:[%s326 + $0xb4] sm:$0xf]
        %v434 = vld [vmem:[%s326 + $0xb8] sm:$0xf]
        %v435 = vld [vmem:[%s326 + $0xbc] sm:$0xf]
        %v436 = vunpack.c.l.bf16 %v388
        %v437 = vunpack.c.l.bf16 %v389
        %v438 = vunpack.c.l.bf16 %v390
        %v439 = vunpack.c.l.bf16 %v391
        %v440 = vunpack.c.l.bf16 %v392
        %v441 = vunpack.c.l.bf16 %v393
        %v442 = vunpack.c.l.bf16 %v394
        %v443 = vunpack.c.l.bf16 %v395
        %v444 = vunpack.c.l.bf16 %v396
        %v445 = vunpack.c.l.bf16 %v397
        %v446 = vunpack.c.l.bf16 %v398
        %v447 = vunpack.c.l.bf16 %v399
        %v448 = vunpack.c.l.bf16 %v400
        %v449 = vunpack.c.l.bf16 %v401
        %v450 = vunpack.c.l.bf16 %v402
        %v451 = vunpack.c.l.bf16 %v403
        %v452 = vunpack.c.l.bf16 %v404
        %v453 = vunpack.c.l.bf16 %v405
        %v454 = vunpack.c.l.bf16 %v406
        %v455 = vunpack.c.l.bf16 %v407
        %v456 = vunpack.c.l.bf16 %v408
        %v457 = vunpack.c.l.bf16 %v409
        %v458 = vunpack.c.l.bf16 %v410
        %v459 = vunpack.c.l.bf16 %v411
        %v460 = vunpack.c.l.bf16 %v412
        %v461 = vunpack.c.l.bf16 %v413
        %v462 = vunpack.c.l.bf16 %v414
        %v463 = vunpack.c.l.bf16 %v415
        %v464 = vunpack.c.l.bf16 %v416
        %v465 = vunpack.c.l.bf16 %v417
        %v466 = vunpack.c.l.bf16 %v418
        %v467 = vunpack.c.l.bf16 %v419
        %v468 = vunpack.c.l.bf16 %v420
        %v469 = vunpack.c.l.bf16 %v421
        %v470 = vunpack.c.l.bf16 %v422
        %v471 = vunpack.c.l.bf16 %v423
        %v472 = vunpack.c.l.bf16 %v424
        %v473 = vunpack.c.l.bf16 %v425
        %v474 = vunpack.c.l.bf16 %v426
        %v475 = vunpack.c.l.bf16 %v427
        %v476 = vunpack.c.l.bf16 %v428
        %v477 = vunpack.c.l.bf16 %v429
        %v478 = vunpack.c.l.bf16 %v430
        %v479 = vunpack.c.l.bf16 %v431
        %v480 = vunpack.c.l.bf16 %v432
        %v481 = vunpack.c.l.bf16 %v433
        %v482 = vunpack.c.l.bf16 %v434
        %v483 = vunpack.c.l.bf16 %v435
        %484 = vst [vmem:[#allocation2] sm:$0xff] %v436
        %485 = vst [vmem:[#allocation2 + $0x8] sm:$0xff] %v437
        %486 = vst [vmem:[#allocation2 + $0x10] sm:$0xff] %v438
        %487 = vst [vmem:[#allocation2 + $0x18] sm:$0xff] %v439
        %488 = vst [vmem:[#allocation2 + $0x20] sm:$0xff] %v440
        %489 = vst [vmem:[#allocation2 + $0x28] sm:$0xff] %v441
        %490 = vst [vmem:[#allocation2 + $0x30] sm:$0xff] %v442
        %491 = vst [vmem:[#allocation2 + $0x38] sm:$0xff] %v443
        %492 = vst [vmem:[#allocation2 + $0x40] sm:$0xff] %v444
        %493 = vst [vmem:[#allocation2 + $0x48] sm:$0xff] %v445
        %494 = vst [vmem:[#allocation2 + $0x50] sm:$0xff] %v446
        %495 = vst [vmem:[#allocation2 + $0x58] sm:$0xff] %v447
        %496 = vst [vmem:[#allocation2 + $0x60] sm:$0xff] %v448
        %497 = vst [vmem:[#allocation2 + $0x68] sm:$0xff] %v449
        %498 = vst [vmem:[#allocation2 + $0x70] sm:$0xff] %v450
        %499 = vst [vmem:[#allocation2 + $0x78] sm:$0xff] %v451
        %500 = vst [vmem:[#allocation2 + $0x80] sm:$0xff] %v452
        %501 = vst [vmem:[#allocation2 + $0x88] sm:$0xff] %v453
        %502 = vst [vmem:[#allocation2 + $0x90] sm:$0xff] %v454
        %503 = vst [vmem:[#allocation2 + $0x98] sm:$0xff] %v455
        %504 = vst [vmem:[#allocation2 + $0xa0] sm:$0xff] %v456
        %505 = vst [vmem:[#allocation2 + $0xa8] sm:$0xff] %v457
        %506 = vst [vmem:[#allocation2 + $0xb0] sm:$0xff] %v458
        %507 = vst [vmem:[#allocation2 + $0xb8] sm:$0xff] %v459
        %508 = vst [vmem:[#allocation2 + $0xc0] sm:$0xff] %v460
        %509 = vst [vmem:[#allocation2 + $0xc8] sm:$0xff] %v461
        %510 = vst [vmem:[#allocation2 + $0xd0] sm:$0xff] %v462
        %511 = vst [vmem:[#allocation2 + $0xd8] sm:$0xff] %v463
        %512 = vst [vmem:[#allocation2 + $0xe0] sm:$0xff] %v464
        %513 = vst [vmem:[#allocation2 + $0xe8] sm:$0xff] %v465
        %514 = vst [vmem:[#allocation2 + $0xf0] sm:$0xff] %v466
        %515 = vst [vmem:[#allocation2 + $0xf8] sm:$0xff] %v467
        %516 = vst [vmem:[#allocation2 + $0x100] sm:$0xff] %v468
        %517 = vst [vmem:[#allocation2 + $0x108] sm:$0xff] %v469
        %518 = vst [vmem:[#allocation2 + $0x110] sm:$0xff] %v470
        %519 = vst [vmem:[#allocation2 + $0x118] sm:$0xff] %v471
        %520 = vst [vmem:[#allocation2 + $0x120] sm:$0xff] %v472
        %521 = vst [vmem:[#allocation2 + $0x128] sm:$0xff] %v473
        %522 = vst [vmem:[#allocation2 + $0x130] sm:$0xff] %v474
        %523 = vst [vmem:[#allocation2 + $0x138] sm:$0xff] %v475
        %524 = vst [vmem:[#allocation2 + $0x140] sm:$0xff] %v476
        %525 = vst [vmem:[#allocation2 + $0x148] sm:$0xff] %v477
        %526 = vst [vmem:[#allocation2 + $0x150] sm:$0xff] %v478
        %527 = vst [vmem:[#allocation2 + $0x158] sm:$0xff] %v479
        %528 = vst [vmem:[#allocation2 + $0x160] sm:$0xff] %v480
        %529 = vst [vmem:[#allocation2 + $0x168] sm:$0xff] %v481
        %530 = vst [vmem:[#allocation2 + $0x170] sm:$0xff] %v482
        %531 = vst [vmem:[#allocation2 + $0x178] sm:$0xff] %v483
        %v532 = vld [vmem:[%s335] sm:$0xf]
        %v533 = vld [vmem:[%s335 + $0x4] sm:$0xf]
        %v534 = vld [vmem:[%s335 + $0x8] sm:$0xf]
        %v535 = vld [vmem:[%s335 + $0xc] sm:$0xf]
        %v536 = vld [vmem:[%s335 + $0x10] sm:$0xf]
        %v537 = vld [vmem:[%s335 + $0x14] sm:$0xf]
        %v538 = vunpack.c.l.bf16 %v532
        %v539 = vunpack.c.l.bf16 %v533
        %v540 = vunpack.c.l.bf16 %v534
        %v541 = vunpack.c.l.bf16 %v535
        %v542 = vunpack.c.l.bf16 %v536
        %v543 = vunpack.c.l.bf16 %v537
        %s544 = scalar_lea.vmem [#allocation2], 384
        %545 = vst [vmem:[%s544] sm:$0xff] %v538
        %546 = vst [vmem:[%s544 + $0x8] sm:$0xff] %v539
        %547 = vst [vmem:[%s544 + $0x10] sm:$0xff] %v540
        %548 = vst [vmem:[%s544 + $0x18] sm:$0xff] %v541
        %549 = vst [vmem:[%s544 + $0x20] sm:$0xff] %v542
        %550 = vst [vmem:[%s544 + $0x28] sm:$0xff] %v543
        %v551 = vld [vmem:[#allocation2] sm:$0xff]
        %v552 = vld [vmem:[#allocation2 + $0x8] sm:$0xff]
        %v553 = vld [vmem:[#allocation2 + $0x18] sm:$0xff]
        %v554 = vld [vmem:[#allocation2 + $0x20] sm:$0xff]
        %v555 = vld [vmem:[#allocation2 + $0x30] sm:$0xff]
        %v556 = vld [vmem:[#allocation2 + $0x38] sm:$0xff]
        %v557 = vld [vmem:[#allocation2 + $0x48] sm:$0xff]
        %v558 = vld [vmem:[#allocation2 + $0x50] sm:$0xff]
        %v559 = vld [vmem:[#allocation2 + $0x60] sm:$0xff]
        %v560 = vld [vmem:[#allocation2 + $0x68] sm:$0xff]
        %v561 = vld [vmem:[#allocation2 + $0x78] sm:$0xff]
        %v562 = vld [vmem:[#allocation2 + $0x80] sm:$0xff]
        %v563 = vld [vmem:[#allocation2 + $0x90] sm:$0xff]
        %v564 = vld [vmem:[#allocation2 + $0x98] sm:$0xff]
        %v565 = vld [vmem:[#allocation2 + $0xa8] sm:$0xff]
        %v566 = vld [vmem:[#allocation2 + $0xb0] sm:$0xff]
        %v567 = vld [vmem:[#allocation2 + $0xc0] sm:$0xff]
        %v568 = vld [vmem:[#allocation2 + $0xc8] sm:$0xff]
        %v569 = vld [vmem:[#allocation2 + $0xd8] sm:$0xff]
        %v570 = vld [vmem:[#allocation2 + $0xe0] sm:$0xff]
        %v571 = vld [vmem:[#allocation2 + $0xf0] sm:$0xff]
        %v572 = vld [vmem:[#allocation2 + $0xf8] sm:$0xff]
        %v573 = vld [vmem:[#allocation2 + $0x108] sm:$0xff]
        %v574 = vld [vmem:[#allocation2 + $0x110] sm:$0xff]
        %v575 = vld [vmem:[#allocation2 + $0x120] sm:$0xff]
        %v576 = vld [vmem:[#allocation2 + $0x128] sm:$0xff]
        %v577 = vld [vmem:[#allocation2 + $0x138] sm:$0xff]
        %v578 = vld [vmem:[#allocation2 + $0x140] sm:$0xff]
        %v579 = vld [vmem:[#allocation2 + $0x150] sm:$0xff]
        %v580 = vld [vmem:[#allocation2 + $0x158] sm:$0xff]
        %v581 = vld [vmem:[#allocation2 + $0x168] sm:$0xff]
        %v582 = vld [vmem:[#allocation2 + $0x170] sm:$0xff]
        %v583 = vld [vmem:[#allocation8] sm:$0x1]
        %v584 = vlaneseq
        %v585 = vshrl.u32 %v584, 7
        %v586 = vsub.s32 0, %v585
        %v587 = vrot.slane %v583, %v586
        %v588 = vmul.f32 %v551, %v587
        %v589 = vmul.f32 %v552, %v587
        %v590 = vmul.f32 %v553, %v587
        %v591 = vmul.f32 %v554, %v587
        %v592 = vmul.f32 %v555, %v587
        %v593 = vmul.f32 %v556, %v587
        %v594 = vmul.f32 %v557, %v587
        %v595 = vmul.f32 %v558, %v587
        %v596 = vmul.f32 %v559, %v587
        %v597 = vmul.f32 %v560, %v587
        %v598 = vmul.f32 %v561, %v587
        %v599 = vmul.f32 %v562, %v587
        %v600 = vmul.f32 %v563, %v587
        %v601 = vmul.f32 %v564, %v587
        %v602 = vmul.f32 %v565, %v587
        %v603 = vmul.f32 %v566, %v587
        %v604 = vmul.f32 %v567, %v587
        %v605 = vmul.f32 %v568, %v587
        %v606 = vmul.f32 %v569, %v587
        %v607 = vmul.f32 %v570, %v587
        %v608 = vmul.f32 %v571, %v587
        %v609 = vmul.f32 %v572, %v587
        %v610 = vmul.f32 %v573, %v587
        %v611 = vmul.f32 %v574, %v587
        %v612 = vmul.f32 %v575, %v587
        %v613 = vmul.f32 %v576, %v587
        %v614 = vmul.f32 %v577, %v587
        %v615 = vmul.f32 %v578, %v587
        %v616 = vmul.f32 %v579, %v587
        %v617 = vmul.f32 %v580, %v587
        %v618 = vmul.f32 %v581, %v587
        %v619 = vmul.f32 %v582, %v587
        %v620 = vld [vmem:[#allocation2 + $0x1] sm:$0xff]
        %v621 = vld [vmem:[#allocation2 + $0x9] sm:$0xff]
        %v622 = vld [vmem:[#allocation2 + $0x19] sm:$0xff]
        %v623 = vld [vmem:[#allocation2 + $0x21] sm:$0xff]
        %v624 = vld [vmem:[#allocation2 + $0x31] sm:$0xff]
        %v625 = vld [vmem:[#allocation2 + $0x39] sm:$0xff]
        %v626 = vld [vmem:[#allocation2 + $0x49] sm:$0xff]
        %v627 = vld [vmem:[#allocation2 + $0x51] sm:$0xff]
        %v628 = vld [vmem:[#allocation2 + $0x61] sm:$0xff]
        %v629 = vld [vmem:[#allocation2 + $0x69] sm:$0xff]
        %v630 = vld [vmem:[#allocation2 + $0x79] sm:$0xff]
        %v631 = vld [vmem:[#allocation2 + $0x81] sm:$0xff]
        %v632 = vld [vmem:[#allocation2 + $0x91] sm:$0xff]
        %v633 = vld [vmem:[#allocation2 + $0x99] sm:$0xff]
        %v634 = vld [vmem:[#allocation2 + $0xa9] sm:$0xff]
        %v635 = vld [vmem:[#allocation2 + $0xb1] sm:$0xff]
        %v636 = vld [vmem:[#allocation2 + $0xc1] sm:$0xff]
        %v637 = vld [vmem:[#allocation2 + $0xc9] sm:$0xff]
        %v638 = vld [vmem:[#allocation2 + $0xd9] sm:$0xff]
        %v639 = vld [vmem:[#allocation2 + $0xe1] sm:$0xff]
        %v640 = vld [vmem:[#allocation2 + $0xf1] sm:$0xff]
        %v641 = vld [vmem:[#allocation2 + $0xf9] sm:$0xff]
        %v642 = vld [vmem:[#allocation2 + $0x109] sm:$0xff]
        %v643 = vld [vmem:[#allocation2 + $0x111] sm:$0xff]
        %v644 = vld [vmem:[#allocation2 + $0x121] sm:$0xff]
        %v645 = vld [vmem:[#allocation2 + $0x129] sm:$0xff]
        %v646 = vld [vmem:[#allocation2 + $0x139] sm:$0xff]
        %v647 = vld [vmem:[#allocation2 + $0x141] sm:$0xff]
        %v648 = vld [vmem:[#allocation2 + $0x151] sm:$0xff]
        %v649 = vld [vmem:[#allocation2 + $0x159] sm:$0xff]
        %v650 = vld [vmem:[#allocation2 + $0x169] sm:$0xff]
        %v651 = vld [vmem:[#allocation2 + $0x171] sm:$0xff]
        %v652 = vld [vmem:[#allocation8 + $0x1] sm:$0x1]
        %v653 = vlaneseq
        %v654 = vshrl.u32 %v653, 7
        %v655 = vsub.s32 0, %v654
        %v656 = vrot.slane %v652, %v655
        %v657 = vmul.f32 %v620, %v656
        %v658 = vmul.f32 %v621, %v656
        %v659 = vmul.f32 %v622, %v656
        %v660 = vmul.f32 %v623, %v656
        %v661 = vmul.f32 %v624, %v656
        %v662 = vmul.f32 %v625, %v656
        %v663 = vmul.f32 %v626, %v656
        %v664 = vmul.f32 %v627, %v656
        %v665 = vmul.f32 %v628, %v656
        %v666 = vmul.f32 %v629, %v656
        %v667 = vmul.f32 %v630, %v656
        %v668 = vmul.f32 %v631, %v656
        %v669 = vmul.f32 %v632, %v656
        %v670 = vmul.f32 %v633, %v656
        %v671 = vmul.f32 %v634, %v656
        %v672 = vmul.f32 %v635, %v656
        %v673 = vmul.f32 %v636, %v656
        %v674 = vmul.f32 %v637, %v656
        %v675 = vmul.f32 %v638, %v656
        %v676 = vmul.f32 %v639, %v656
        %v677 = vmul.f32 %v640, %v656
        %v678 = vmul.f32 %v641, %v656
        %v679 = vmul.f32 %v642, %v656
        %v680 = vmul.f32 %v643, %v656
        %v681 = vmul.f32 %v644, %v656
        %v682 = vmul.f32 %v645, %v656
        %v683 = vmul.f32 %v646, %v656
        %v684 = vmul.f32 %v647, %v656
        %v685 = vmul.f32 %v648, %v656
        %v686 = vmul.f32 %v649, %v656
        %v687 = vmul.f32 %v650, %v656
        %v688 = vmul.f32 %v651, %v656
        %v689 = vld [vmem:[#allocation2 + $0x2] sm:$0xff]
        %v690 = vld [vmem:[#allocation2 + $0xa] sm:$0xff]
        %v691 = vld [vmem:[#allocation2 + $0x1a] sm:$0xff]
        %v692 = vld [vmem:[#allocation2 + $0x22] sm:$0xff]
        %v693 = vld [vmem:[#allocation2 + $0x32] sm:$0xff]
        %v694 = vld [vmem:[#allocation2 + $0x3a] sm:$0xff]
        %v695 = vld [vmem:[#allocation2 + $0x4a] sm:$0xff]
        %v696 = vld [vmem:[#allocation2 + $0x52] sm:$0xff]
        %v697 = vld [vmem:[#allocation2 + $0x62] sm:$0xff]
        %v698 = vld [vmem:[#allocation2 + $0x6a] sm:$0xff]
        %v699 = vld [vmem:[#allocation2 + $0x7a] sm:$0xff]
        %v700 = vld [vmem:[#allocation2 + $0x82] sm:$0xff]
        %v701 = vld [vmem:[#allocation2 + $0x92] sm:$0xff]
        %v702 = vld [vmem:[#allocation2 + $0x9a] sm:$0xff]
        %v703 = vld [vmem:[#allocation2 + $0xaa] sm:$0xff]
        %v704 = vld [vmem:[#allocation2 + $0xb2] sm:$0xff]
        %v705 = vld [vmem:[#allocation2 + $0xc2] sm:$0xff]
        %v706 = vld [vmem:[#allocation2 + $0xca] sm:$0xff]
        %v707 = vld [vmem:[#allocation2 + $0xda] sm:$0xff]
        %v708 = vld [vmem:[#allocation2 + $0xe2] sm:$0xff]
        %v709 = vld [vmem:[#allocation2 + $0xf2] sm:$0xff]
        %v710 = vld [vmem:[#allocation2 + $0xfa] sm:$0xff]
        %v711 = vld [vmem:[#allocation2 + $0x10a] sm:$0xff]
        %v712 = vld [vmem:[#allocation2 + $0x112] sm:$0xff]
        %v713 = vld [vmem:[#allocation2 + $0x122] sm:$0xff]
        %v714 = vld [vmem:[#allocation2 + $0x12a] sm:$0xff]
        %v715 = vld [vmem:[#allocation2 + $0x13a] sm:$0xff]
        %v716 = vld [vmem:[#allocation2 + $0x142] sm:$0xff]
        %v717 = vld [vmem:[#allocation2 + $0x152] sm:$0xff]
        %v718 = vld [vmem:[#allocation2 + $0x15a] sm:$0xff]
        %v719 = vld [vmem:[#allocation2 + $0x16a] sm:$0xff]
        %v720 = vld [vmem:[#allocation2 + $0x172] sm:$0xff]
        %v721 = vld [vmem:[#allocation8 + $0x2] sm:$0x1]
        %v722 = vlaneseq
        %v723 = vshrl.u32 %v722, 7
        %v724 = vsub.s32 0, %v723
        %v725 = vrot.slane %v721, %v724
        %v726 = vmul.f32 %v689, %v725
        %v727 = vmul.f32 %v690, %v725
        %v728 = vmul.f32 %v691, %v725
        %v729 = vmul.f32 %v692, %v725
        %v730 = vmul.f32 %v693, %v725
        %v731 = vmul.f32 %v694, %v725
        %v732 = vmul.f32 %v695, %v725
        %v733 = vmul.f32 %v696, %v725
        %v734 = vmul.f32 %v697, %v725
        %v735 = vmul.f32 %v698, %v725
        %v736 = vmul.f32 %v699, %v725
        %v737 = vmul.f32 %v700, %v725
        %v738 = vmul.f32 %v701, %v725
        %v739 = vmul.f32 %v702, %v725
        %v740 = vmul.f32 %v703, %v725
        %v741 = vmul.f32 %v704, %v725
        %v742 = vmul.f32 %v705, %v725
        %v743 = vmul.f32 %v706, %v725
        %v744 = vmul.f32 %v707, %v725
        %v745 = vmul.f32 %v708, %v725
        %v746 = vmul.f32 %v709, %v725
        %v747 = vmul.f32 %v710, %v725
        %v748 = vmul.f32 %v711, %v725
        %v749 = vmul.f32 %v712, %v725
        %v750 = vmul.f32 %v713, %v725
        %v751 = vmul.f32 %v714, %v725
        %v752 = vmul.f32 %v715, %v725
        %v753 = vmul.f32 %v716, %v725
        %v754 = vmul.f32 %v717, %v725
        %v755 = vmul.f32 %v718, %v725
        %v756 = vmul.f32 %v719, %v725
        %v757 = vmul.f32 %v720, %v725
        %v758 = vadd.f32 %v588, %v726
        %v759 = vadd.f32 %v589, %v727
        %v760 = vadd.f32 %v590, %v728
        %v761 = vadd.f32 %v591, %v729
        %v762 = vadd.f32 %v592, %v730
        %v763 = vadd.f32 %v593, %v731
        %v764 = vadd.f32 %v594, %v732
        %v765 = vadd.f32 %v595, %v733
        %v766 = vadd.f32 %v596, %v734
        %v767 = vadd.f32 %v597, %v735
        %v768 = vadd.f32 %v598, %v736
        %v769 = vadd.f32 %v599, %v737
        %v770 = vadd.f32 %v600, %v738
        %v771 = vadd.f32 %v601, %v739
        %v772 = vadd.f32 %v602, %v740
        %v773 = vadd.f32 %v603, %v741
        %v774 = vadd.f32 %v604, %v742
        %v775 = vadd.f32 %v605, %v743
        %v776 = vadd.f32 %v606, %v744
        %v777 = vadd.f32 %v607, %v745
        %v778 = vadd.f32 %v608, %v746
        %v779 = vadd.f32 %v609, %v747
        %v780 = vadd.f32 %v610, %v748
        %v781 = vadd.f32 %v611, %v749
        %v782 = vadd.f32 %v612, %v750
        %v783 = vadd.f32 %v613, %v751
        %v784 = vadd.f32 %v614, %v752
        %v785 = vadd.f32 %v615, %v753
        %v786 = vadd.f32 %v616, %v754
        %v787 = vadd.f32 %v617, %v755
        %v788 = vadd.f32 %v618, %v756
        %v789 = vadd.f32 %v619, %v757
        %s790 = scalar_lea.vmem [#allocation2], 24
        %v791 = vld [vmem:[%s790] sm:$0xff]
        %v792 = vld [vmem:[%s790 + $0x8] sm:$0xff]
        %v793 = vld [vmem:[%s790 + $0x18] sm:$0xff]
        %v794 = vld [vmem:[%s790 + $0x20] sm:$0xff]
        %v795 = vld [vmem:[%s790 + $0x30] sm:$0xff]
        %v796 = vld [vmem:[%s790 + $0x38] sm:$0xff]
        %v797 = vld [vmem:[%s790 + $0x48] sm:$0xff]
        %v798 = vld [vmem:[%s790 + $0x50] sm:$0xff]
        %v799 = vld [vmem:[%s790 + $0x60] sm:$0xff]
        %v800 = vld [vmem:[%s790 + $0x68] sm:$0xff]
        %v801 = vld [vmem:[%s790 + $0x78] sm:$0xff]
        %v802 = vld [vmem:[%s790 + $0x80] sm:$0xff]
        %v803 = vld [vmem:[%s790 + $0x90] sm:$0xff]
        %v804 = vld [vmem:[%s790 + $0x98] sm:$0xff]
        %v805 = vld [vmem:[%s790 + $0xa8] sm:$0xff]
        %v806 = vld [vmem:[%s790 + $0xb0] sm:$0xff]
        %v807 = vld [vmem:[%s790 + $0xc0] sm:$0xff]
        %v808 = vld [vmem:[%s790 + $0xc8] sm:$0xff]
        %v809 = vld [vmem:[%s790 + $0xd8] sm:$0xff]
        %v810 = vld [vmem:[%s790 + $0xe0] sm:$0xff]
        %v811 = vld [vmem:[%s790 + $0xf0] sm:$0xff]
        %v812 = vld [vmem:[%s790 + $0xf8] sm:$0xff]
        %v813 = vld [vmem:[%s790 + $0x108] sm:$0xff]
        %v814 = vld [vmem:[%s790 + $0x110] sm:$0xff]
        %v815 = vld [vmem:[%s790 + $0x120] sm:$0xff]
        %v816 = vld [vmem:[%s790 + $0x128] sm:$0xff]
        %v817 = vld [vmem:[%s790 + $0x138] sm:$0xff]
        %v818 = vld [vmem:[%s790 + $0x140] sm:$0xff]
        %v819 = vld [vmem:[%s790 + $0x150] sm:$0xff]
        %v820 = vld [vmem:[%s790 + $0x158] sm:$0xff]
        %v821 = vld [vmem:[%s790 + $0x168] sm:$0xff]
        %v822 = vld [vmem:[%s790 + $0x170] sm:$0xff]
        %v823 = vld [vmem:[#allocation8 + $0x3] sm:$0x1]
        %v824 = vlaneseq
        %v825 = vshrl.u32 %v824, 7
        %v826 = vsub.s32 0, %v825
        %v827 = vrot.slane %v823, %v826
        %v828 = vmul.f32 %v791, %v827
        %v829 = vmul.f32 %v792, %v827
        %v830 = vmul.f32 %v793, %v827
        %v831 = vmul.f32 %v794, %v827
        %v832 = vmul.f32 %v795, %v827
        %v833 = vmul.f32 %v796, %v827
        %v834 = vmul.f32 %v797, %v827
        %v835 = vmul.f32 %v798, %v827
        %v836 = vmul.f32 %v799, %v827
        %v837 = vmul.f32 %v800, %v827
        %v838 = vmul.f32 %v801, %v827
        %v839 = vmul.f32 %v802, %v827
        %v840 = vmul.f32 %v803, %v827
        %v841 = vmul.f32 %v804, %v827
        %v842 = vmul.f32 %v805, %v827
        %v843 = vmul.f32 %v806, %v827
        %v844 = vmul.f32 %v807, %v827
        %v845 = vmul.f32 %v808, %v827
        %v846 = vmul.f32 %v809, %v827
        %v847 = vmul.f32 %v810, %v827
        %v848 = vmul.f32 %v811, %v827
        %v849 = vmul.f32 %v812, %v827
        %v850 = vmul.f32 %v813, %v827
        %v851 = vmul.f32 %v814, %v827
        %v852 = vmul.f32 %v815, %v827
        %v853 = vmul.f32 %v816, %v827
        %v854 = vmul.f32 %v817, %v827
        %v855 = vmul.f32 %v818, %v827
        %v856 = vmul.f32 %v819, %v827
        %v857 = vmul.f32 %v820, %v827
        %v858 = vmul.f32 %v821, %v827
        %v859 = vmul.f32 %v822, %v827
        %v860 = vadd.f32 %v657, %v828
        %v861 = vadd.f32 %v658, %v829
        %v862 = vadd.f32 %v659, %v830
        %v863 = vadd.f32 %v660, %v831
        %v864 = vadd.f32 %v661, %v832
        %v865 = vadd.f32 %v662, %v833
        %v866 = vadd.f32 %v663, %v834
        %v867 = vadd.f32 %v664, %v835
        %v868 = vadd.f32 %v665, %v836
        %v869 = vadd.f32 %v666, %v837
        %v870 = vadd.f32 %v667, %v838
        %v871 = vadd.f32 %v668, %v839
        %v872 = vadd.f32 %v669, %v840
        %v873 = vadd.f32 %v670, %v841
        %v874 = vadd.f32 %v671, %v842
        %v875 = vadd.f32 %v672, %v843
        %v876 = vadd.f32 %v673, %v844
        %v877 = vadd.f32 %v674, %v845
        %v878 = vadd.f32 %v675, %v846
        %v879 = vadd.f32 %v676, %v847
        %v880 = vadd.f32 %v677, %v848
        %v881 = vadd.f32 %v678, %v849
        %v882 = vadd.f32 %v679, %v850
        %v883 = vadd.f32 %v680, %v851
        %v884 = vadd.f32 %v681, %v852
        %v885 = vadd.f32 %v682, %v853
        %v886 = vadd.f32 %v683, %v854
        %v887 = vadd.f32 %v684, %v855
        %v888 = vadd.f32 %v685, %v856
        %v889 = vadd.f32 %v686, %v857
        %v890 = vadd.f32 %v687, %v858
        %v891 = vadd.f32 %v688, %v859
        %v892 = vld [vmem:[%s790 + $0x1] sm:$0xff]
        %v893 = vld [vmem:[%s790 + $0x9] sm:$0xff]
        %v894 = vld [vmem:[%s790 + $0x19] sm:$0xff]
        %v895 = vld [vmem:[%s790 + $0x21] sm:$0xff]
        %v896 = vld [vmem:[%s790 + $0x31] sm:$0xff]
        %v897 = vld [vmem:[%s790 + $0x39] sm:$0xff]
        %v898 = vld [vmem:[%s790 + $0x49] sm:$0xff]
        %v899 = vld [vmem:[%s790 + $0x51] sm:$0xff]
        %v900 = vld [vmem:[%s790 + $0x61] sm:$0xff]
        %v901 = vld [vmem:[%s790 + $0x69] sm:$0xff]
        %v902 = vld [vmem:[%s790 + $0x79] sm:$0xff]
        %v903 = vld [vmem:[%s790 + $0x81] sm:$0xff]
        %v904 = vld [vmem:[%s790 + $0x91] sm:$0xff]
        %v905 = vld [vmem:[%s790 + $0x99] sm:$0xff]
        %v906 = vld [vmem:[%s790 + $0xa9] sm:$0xff]
        %v907 = vld [vmem:[%s790 + $0xb1] sm:$0xff]
        %v908 = vld [vmem:[%s790 + $0xc1] sm:$0xff]
        %v909 = vld [vmem:[%s790 + $0xc9] sm:$0xff]
        %v910 = vld [vmem:[%s790 + $0xd9] sm:$0xff]
        %v911 = vld [vmem:[%s790 + $0xe1] sm:$0xff]
        %v912 = vld [vmem:[%s790 + $0xf1] sm:$0xff]
        %v913 = vld [vmem:[%s790 + $0xf9] sm:$0xff]
        %v914 = vld [vmem:[%s790 + $0x109] sm:$0xff]
        %v915 = vld [vmem:[%s790 + $0x111] sm:$0xff]
        %v916 = vld [vmem:[%s790 + $0x121] sm:$0xff]
        %v917 = vld [vmem:[%s790 + $0x129] sm:$0xff]
        %v918 = vld [vmem:[%s790 + $0x139] sm:$0xff]
        %v919 = vld [vmem:[%s790 + $0x141] sm:$0xff]
        %v920 = vld [vmem:[%s790 + $0x151] sm:$0xff]
        %v921 = vld [vmem:[%s790 + $0x159] sm:$0xff]
        %v922 = vld [vmem:[%s790 + $0x169] sm:$0xff]
        %v923 = vld [vmem:[%s790 + $0x171] sm:$0xff]
        %v924 = vld [vmem:[#allocation8 + $0x4] sm:$0x1]
        %v925 = vlaneseq
        %v926 = vshrl.u32 %v925, 7
        %v927 = vsub.s32 0, %v926
        %v928 = vrot.slane %v924, %v927
        %v929 = vmul.f32 %v892, %v928
        %v930 = vmul.f32 %v893, %v928
        %v931 = vmul.f32 %v894, %v928
        %v932 = vmul.f32 %v895, %v928
        %v933 = vmul.f32 %v896, %v928
        %v934 = vmul.f32 %v897, %v928
        %v935 = vmul.f32 %v898, %v928
        %v936 = vmul.f32 %v899, %v928
        %v937 = vmul.f32 %v900, %v928
        %v938 = vmul.f32 %v901, %v928
        %v939 = vmul.f32 %v902, %v928
        %v940 = vmul.f32 %v903, %v928
        %v941 = vmul.f32 %v904, %v928
        %v942 = vmul.f32 %v905, %v928
        %v943 = vmul.f32 %v906, %v928
        %v944 = vmul.f32 %v907, %v928
        %v945 = vmul.f32 %v908, %v928
        %v946 = vmul.f32 %v909, %v928
        %v947 = vmul.f32 %v910, %v928
        %v948 = vmul.f32 %v911, %v928
        %v949 = vmul.f32 %v912, %v928
        %v950 = vmul.f32 %v913, %v928
        %v951 = vmul.f32 %v914, %v928
        %v952 = vmul.f32 %v915, %v928
        %v953 = vmul.f32 %v916, %v928
        %v954 = vmul.f32 %v917, %v928
        %v955 = vmul.f32 %v918, %v928
        %v956 = vmul.f32 %v919, %v928
        %v957 = vmul.f32 %v920, %v928
        %v958 = vmul.f32 %v921, %v928
        %v959 = vmul.f32 %v922, %v928
        %v960 = vmul.f32 %v923, %v928
        %v961 = vadd.f32 %v758, %v929
        %v962 = vadd.f32 %v759, %v930
        %v963 = vadd.f32 %v760, %v931
        %v964 = vadd.f32 %v761, %v932
        %v965 = vadd.f32 %v762, %v933
        %v966 = vadd.f32 %v763, %v934
        %v967 = vadd.f32 %v764, %v935
        %v968 = vadd.f32 %v765, %v936
        %v969 = vadd.f32 %v766, %v937
        %v970 = vadd.f32 %v767, %v938
        %v971 = vadd.f32 %v768, %v939
        %v972 = vadd.f32 %v769, %v940
        %v973 = vadd.f32 %v770, %v941
        %v974 = vadd.f32 %v771, %v942
        %v975 = vadd.f32 %v772, %v943
        %v976 = vadd.f32 %v773, %v944
        %v977 = vadd.f32 %v774, %v945
        %v978 = vadd.f32 %v775, %v946
        %v979 = vadd.f32 %v776, %v947
        %v980 = vadd.f32 %v777, %v948
        %v981 = vadd.f32 %v778, %v949
        %v982 = vadd.f32 %v779, %v950
        %v983 = vadd.f32 %v780, %v951
        %v984 = vadd.f32 %v781, %v952
        %v985 = vadd.f32 %v782, %v953
        %v986 = vadd.f32 %v783, %v954
        %v987 = vadd.f32 %v784, %v955
        %v988 = vadd.f32 %v785, %v956
        %v989 = vadd.f32 %v786, %v957
        %v990 = vadd.f32 %v787, %v958
        %v991 = vadd.f32 %v788, %v959
        %v992 = vadd.f32 %v789, %v960
        %v993 = vld [vmem:[%s790 + $0x2] sm:$0xff]
        %v994 = vld [vmem:[%s790 + $0xa] sm:$0xff]
        %v995 = vld [vmem:[%s790 + $0x1a] sm:$0xff]
        %v996 = vld [vmem:[%s790 + $0x22] sm:$0xff]
        %v997 = vld [vmem:[%s790 + $0x32] sm:$0xff]
        %v998 = vld [vmem:[%s790 + $0x3a] sm:$0xff]
        %v999 = vld [vmem:[%s790 + $0x4a] sm:$0xff]
        %v1000 = vld [vmem:[%s790 + $0x52] sm:$0xff]
        %v1001 = vld [vmem:[%s790 + $0x62] sm:$0xff]
        %v1002 = vld [vmem:[%s790 + $0x6a] sm:$0xff]
        %v1003 = vld [vmem:[%s790 + $0x7a] sm:$0xff]
        %v1004 = vld [vmem:[%s790 + $0x82] sm:$0xff]
        %v1005 = vld [vmem:[%s790 + $0x92] sm:$0xff]
        %v1006 = vld [vmem:[%s790 + $0x9a] sm:$0xff]
        %v1007 = vld [vmem:[%s790 + $0xaa] sm:$0xff]
        %v1008 = vld [vmem:[%s790 + $0xb2] sm:$0xff]
        %v1009 = vld [vmem:[%s790 + $0xc2] sm:$0xff]
        %v1010 = vld [vmem:[%s790 + $0xca] sm:$0xff]
        %v1011 = vld [vmem:[%s790 + $0xda] sm:$0xff]
        %v1012 = vld [vmem:[%s790 + $0xe2] sm:$0xff]
        %v1013 = vld [vmem:[%s790 + $0xf2] sm:$0xff]
        %v1014 = vld [vmem:[%s790 + $0xfa] sm:$0xff]
        %v1015 = vld [vmem:[%s790 + $0x10a] sm:$0xff]
        %v1016 = vld [vmem:[%s790 + $0x112] sm:$0xff]
        %v1017 = vld [vmem:[%s790 + $0x122] sm:$0xff]
        %v1018 = vld [vmem:[%s790 + $0x12a] sm:$0xff]
        %v1019 = vld [vmem:[%s790 + $0x13a] sm:$0xff]
        %v1020 = vld [vmem:[%s790 + $0x142] sm:$0xff]
        %v1021 = vld [vmem:[%s790 + $0x152] sm:$0xff]
        %v1022 = vld [vmem:[%s790 + $0x15a] sm:$0xff]
        %v1023 = vld [vmem:[%s790 + $0x16a] sm:$0xff]
        %v1024 = vld [vmem:[%s790 + $0x172] sm:$0xff]
        %v1025 = vld [vmem:[#allocation8 + $0x5] sm:$0x1]
        %v1026 = vlaneseq
        %v1027 = vshrl.u32 %v1026, 7
        %v1028 = vsub.s32 0, %v1027
        %v1029 = vrot.slane %v1025, %v1028
        %v1030 = vmul.f32 %v993, %v1029
        %v1031 = vmul.f32 %v994, %v1029
        %v1032 = vmul.f32 %v995, %v1029
        %v1033 = vmul.f32 %v996, %v1029
        %v1034 = vmul.f32 %v997, %v1029
        %v1035 = vmul.f32 %v998, %v1029
        %v1036 = vmul.f32 %v999, %v1029
        %v1037 = vmul.f32 %v1000, %v1029
        %v1038 = vmul.f32 %v1001, %v1029
        %v1039 = vmul.f32 %v1002, %v1029
        %v1040 = vmul.f32 %v1003, %v1029
        %v1041 = vmul.f32 %v1004, %v1029
        %v1042 = vmul.f32 %v1005, %v1029
        %v1043 = vmul.f32 %v1006, %v1029
        %v1044 = vmul.f32 %v1007, %v1029
        %v1045 = vmul.f32 %v1008, %v1029
        %v1046 = vmul.f32 %v1009, %v1029
        %v1047 = vmul.f32 %v1010, %v1029
        %v1048 = vmul.f32 %v1011, %v1029
        %v1049 = vmul.f32 %v1012, %v1029
        %v1050 = vmul.f32 %v1013, %v1029
        %v1051 = vmul.f32 %v1014, %v1029
        %v1052 = vmul.f32 %v1015, %v1029
        %v1053 = vmul.f32 %v1016, %v1029
        %v1054 = vmul.f32 %v1017, %v1029
        %v1055 = vmul.f32 %v1018, %v1029
        %v1056 = vmul.f32 %v1019, %v1029
        %v1057 = vmul.f32 %v1020, %v1029
        %v1058 = vmul.f32 %v1021, %v1029
        %v1059 = vmul.f32 %v1022, %v1029
        %v1060 = vmul.f32 %v1023, %v1029
        %v1061 = vmul.f32 %v1024, %v1029
        %v1062 = vadd.f32 %v860, %v1030
        %v1063 = vadd.f32 %v861, %v1031
        %v1064 = vadd.f32 %v862, %v1032
        %v1065 = vadd.f32 %v863, %v1033
        %v1066 = vadd.f32 %v864, %v1034
        %v1067 = vadd.f32 %v865, %v1035
        %v1068 = vadd.f32 %v866, %v1036
        %v1069 = vadd.f32 %v867, %v1037
        %v1070 = vadd.f32 %v868, %v1038
        %v1071 = vadd.f32 %v869, %v1039
        %v1072 = vadd.f32 %v870, %v1040
        %v1073 = vadd.f32 %v871, %v1041
        %v1074 = vadd.f32 %v872, %v1042
        %v1075 = vadd.f32 %v873, %v1043
        %v1076 = vadd.f32 %v874, %v1044
        %v1077 = vadd.f32 %v875, %v1045
        %v1078 = vadd.f32 %v876, %v1046
        %v1079 = vadd.f32 %v877, %v1047
        %v1080 = vadd.f32 %v878, %v1048
        %v1081 = vadd.f32 %v879, %v1049
        %v1082 = vadd.f32 %v880, %v1050
        %v1083 = vadd.f32 %v881, %v1051
        %v1084 = vadd.f32 %v882, %v1052
        %v1085 = vadd.f32 %v883, %v1053
        %v1086 = vadd.f32 %v884, %v1054
        %v1087 = vadd.f32 %v885, %v1055
        %v1088 = vadd.f32 %v886, %v1056
        %v1089 = vadd.f32 %v887, %v1057
        %v1090 = vadd.f32 %v888, %v1058
        %v1091 = vadd.f32 %v889, %v1059
        %v1092 = vadd.f32 %v890, %v1060
        %v1093 = vadd.f32 %v891, %v1061
        %s1094 = scalar_lea.vmem [#allocation2], 48
        %v1095 = vld [vmem:[%s1094] sm:$0xff]
        %v1096 = vld [vmem:[%s1094 + $0x8] sm:$0xff]
        %v1097 = vld [vmem:[%s1094 + $0x18] sm:$0xff]
        %v1098 = vld [vmem:[%s1094 + $0x20] sm:$0xff]
        %v1099 = vld [vmem:[%s1094 + $0x30] sm:$0xff]
        %v1100 = vld [vmem:[%s1094 + $0x38] sm:$0xff]
        %v1101 = vld [vmem:[%s1094 + $0x48] sm:$0xff]
        %v1102 = vld [vmem:[%s1094 + $0x50] sm:$0xff]
        %v1103 = vld [vmem:[%s1094 + $0x60] sm:$0xff]
        %v1104 = vld [vmem:[%s1094 + $0x68] sm:$0xff]
        %v1105 = vld [vmem:[%s1094 + $0x78] sm:$0xff]
        %v1106 = vld [vmem:[%s1094 + $0x80] sm:$0xff]
        %v1107 = vld [vmem:[%s1094 + $0x90] sm:$0xff]
        %v1108 = vld [vmem:[%s1094 + $0x98] sm:$0xff]
        %v1109 = vld [vmem:[%s1094 + $0xa8] sm:$0xff]
        %v1110 = vld [vmem:[%s1094 + $0xb0] sm:$0xff]
        %v1111 = vld [vmem:[%s1094 + $0xc0] sm:$0xff]
        %v1112 = vld [vmem:[%s1094 + $0xc8] sm:$0xff]
        %v1113 = vld [vmem:[%s1094 + $0xd8] sm:$0xff]
        %v1114 = vld [vmem:[%s1094 + $0xe0] sm:$0xff]
        %v1115 = vld [vmem:[%s1094 + $0xf0] sm:$0xff]
        %v1116 = vld [vmem:[%s1094 + $0xf8] sm:$0xff]
        %v1117 = vld [vmem:[%s1094 + $0x108] sm:$0xff]
        %v1118 = vld [vmem:[%s1094 + $0x110] sm:$0xff]
        %v1119 = vld [vmem:[%s1094 + $0x120] sm:$0xff]
        %v1120 = vld [vmem:[%s1094 + $0x128] sm:$0xff]
        %v1121 = vld [vmem:[%s1094 + $0x138] sm:$0xff]
        %v1122 = vld [vmem:[%s1094 + $0x140] sm:$0xff]
        %v1123 = vld [vmem:[%s1094 + $0x150] sm:$0xff]
        %v1124 = vld [vmem:[%s1094 + $0x158] sm:$0xff]
        %v1125 = vld [vmem:[%s1094 + $0x168] sm:$0xff]
        %v1126 = vld [vmem:[%s1094 + $0x170] sm:$0xff]
        %v1127 = vld [vmem:[#allocation8 + $0x6] sm:$0x1]
        %v1128 = vlaneseq
        %v1129 = vshrl.u32 %v1128, 7
        %v1130 = vsub.s32 0, %v1129
        %v1131 = vrot.slane %v1127, %v1130
        %v1132 = vmul.f32 %v1095, %v1131
        %v1133 = vmul.f32 %v1096, %v1131
        %v1134 = vmul.f32 %v1097, %v1131
        %v1135 = vmul.f32 %v1098, %v1131
        %v1136 = vmul.f32 %v1099, %v1131
        %v1137 = vmul.f32 %v1100, %v1131
        %v1138 = vmul.f32 %v1101, %v1131
        %v1139 = vmul.f32 %v1102, %v1131
        %v1140 = vmul.f32 %v1103, %v1131
        %v1141 = vmul.f32 %v1104, %v1131
        %v1142 = vmul.f32 %v1105, %v1131
        %v1143 = vmul.f32 %v1106, %v1131
        %v1144 = vmul.f32 %v1107, %v1131
        %v1145 = vmul.f32 %v1108, %v1131
        %v1146 = vmul.f32 %v1109, %v1131
        %v1147 = vmul.f32 %v1110, %v1131
        %v1148 = vmul.f32 %v1111, %v1131
        %v1149 = vmul.f32 %v1112, %v1131
        %v1150 = vmul.f32 %v1113, %v1131
        %v1151 = vmul.f32 %v1114, %v1131
        %v1152 = vmul.f32 %v1115, %v1131
        %v1153 = vmul.f32 %v1116, %v1131
        %v1154 = vmul.f32 %v1117, %v1131
        %v1155 = vmul.f32 %v1118, %v1131
        %v1156 = vmul.f32 %v1119, %v1131
        %v1157 = vmul.f32 %v1120, %v1131
        %v1158 = vmul.f32 %v1121, %v1131
        %v1159 = vmul.f32 %v1122, %v1131
        %v1160 = vmul.f32 %v1123, %v1131
        %v1161 = vmul.f32 %v1124, %v1131
        %v1162 = vmul.f32 %v1125, %v1131
        %v1163 = vmul.f32 %v1126, %v1131
        %v1164 = vadd.f32 %v961, %v1132
        %v1165 = vadd.f32 %v962, %v1133
        %v1166 = vadd.f32 %v963, %v1134
        %v1167 = vadd.f32 %v964, %v1135
        %v1168 = vadd.f32 %v965, %v1136
        %v1169 = vadd.f32 %v966, %v1137
        %v1170 = vadd.f32 %v967, %v1138
        %v1171 = vadd.f32 %v968, %v1139
        %v1172 = vadd.f32 %v969, %v1140
        %v1173 = vadd.f32 %v970, %v1141
        %v1174 = vadd.f32 %v971, %v1142
        %v1175 = vadd.f32 %v972, %v1143
        %v1176 = vadd.f32 %v973, %v1144
        %v1177 = vadd.f32 %v974, %v1145
        %v1178 = vadd.f32 %v975, %v1146
        %v1179 = vadd.f32 %v976, %v1147
        %v1180 = vadd.f32 %v977, %v1148
        %v1181 = vadd.f32 %v978, %v1149
        %v1182 = vadd.f32 %v979, %v1150
        %v1183 = vadd.f32 %v980, %v1151
        %v1184 = vadd.f32 %v981, %v1152
        %v1185 = vadd.f32 %v982, %v1153
        %v1186 = vadd.f32 %v983, %v1154
        %v1187 = vadd.f32 %v984, %v1155
        %v1188 = vadd.f32 %v985, %v1156
        %v1189 = vadd.f32 %v986, %v1157
        %v1190 = vadd.f32 %v987, %v1158
        %v1191 = vadd.f32 %v988, %v1159
        %v1192 = vadd.f32 %v989, %v1160
        %v1193 = vadd.f32 %v990, %v1161
        %v1194 = vadd.f32 %v991, %v1162
        %v1195 = vadd.f32 %v992, %v1163
        %v1196 = vld [vmem:[%s1094 + $0x1] sm:$0xff]
        %v1197 = vld [vmem:[%s1094 + $0x9] sm:$0xff]
        %v1198 = vld [vmem:[%s1094 + $0x19] sm:$0xff]
        %v1199 = vld [vmem:[%s1094 + $0x21] sm:$0xff]
        %v1200 = vld [vmem:[%s1094 + $0x31] sm:$0xff]
        %v1201 = vld [vmem:[%s1094 + $0x39] sm:$0xff]
        %v1202 = vld [vmem:[%s1094 + $0x49] sm:$0xff]
        %v1203 = vld [vmem:[%s1094 + $0x51] sm:$0xff]
        %v1204 = vld [vmem:[%s1094 + $0x61] sm:$0xff]
        %v1205 = vld [vmem:[%s1094 + $0x69] sm:$0xff]
        %v1206 = vld [vmem:[%s1094 + $0x79] sm:$0xff]
        %v1207 = vld [vmem:[%s1094 + $0x81] sm:$0xff]
        %v1208 = vld [vmem:[%s1094 + $0x91] sm:$0xff]
        %v1209 = vld [vmem:[%s1094 + $0x99] sm:$0xff]
        %v1210 = vld [vmem:[%s1094 + $0xa9] sm:$0xff]
        %v1211 = vld [vmem:[%s1094 + $0xb1] sm:$0xff]
        %v1212 = vld [vmem:[%s1094 + $0xc1] sm:$0xff]
        %v1213 = vld [vmem:[%s1094 + $0xc9] sm:$0xff]
        %v1214 = vld [vmem:[%s1094 + $0xd9] sm:$0xff]
        %v1215 = vld [vmem:[%s1094 + $0xe1] sm:$0xff]
        %v1216 = vld [vmem:[%s1094 + $0xf1] sm:$0xff]
        %v1217 = vld [vmem:[%s1094 + $0xf9] sm:$0xff]
        %v1218 = vld [vmem:[%s1094 + $0x109] sm:$0xff]
        %v1219 = vld [vmem:[%s1094 + $0x111] sm:$0xff]
        %v1220 = vld [vmem:[%s1094 + $0x121] sm:$0xff]
        %v1221 = vld [vmem:[%s1094 + $0x129] sm:$0xff]
        %v1222 = vld [vmem:[%s1094 + $0x139] sm:$0xff]
        %v1223 = vld [vmem:[%s1094 + $0x141] sm:$0xff]
        %v1224 = vld [vmem:[%s1094 + $0x151] sm:$0xff]
        %v1225 = vld [vmem:[%s1094 + $0x159] sm:$0xff]
        %v1226 = vld [vmem:[%s1094 + $0x169] sm:$0xff]
        %v1227 = vld [vmem:[%s1094 + $0x171] sm:$0xff]
        %v1228 = vld [vmem:[#allocation8 + $0x7] sm:$0x1]
        %v1229 = vlaneseq
        %v1230 = vshrl.u32 %v1229, 7
        %v1231 = vsub.s32 0, %v1230
        %v1232 = vrot.slane %v1228, %v1231
        %v1233 = vmul.f32 %v1196, %v1232
        %v1234 = vmul.f32 %v1197, %v1232
        %v1235 = vmul.f32 %v1198, %v1232
        %v1236 = vmul.f32 %v1199, %v1232
        %v1237 = vmul.f32 %v1200, %v1232
        %v1238 = vmul.f32 %v1201, %v1232
        %v1239 = vmul.f32 %v1202, %v1232
        %v1240 = vmul.f32 %v1203, %v1232
        %v1241 = vmul.f32 %v1204, %v1232
        %v1242 = vmul.f32 %v1205, %v1232
        %v1243 = vmul.f32 %v1206, %v1232
        %v1244 = vmul.f32 %v1207, %v1232
        %v1245 = vmul.f32 %v1208, %v1232
        %v1246 = vmul.f32 %v1209, %v1232
        %v1247 = vmul.f32 %v1210, %v1232
        %v1248 = vmul.f32 %v1211, %v1232
        %v1249 = vmul.f32 %v1212, %v1232
        %v1250 = vmul.f32 %v1213, %v1232
        %v1251 = vmul.f32 %v1214, %v1232
        %v1252 = vmul.f32 %v1215, %v1232
        %v1253 = vmul.f32 %v1216, %v1232
        %v1254 = vmul.f32 %v1217, %v1232
        %v1255 = vmul.f32 %v1218, %v1232
        %v1256 = vmul.f32 %v1219, %v1232
        %v1257 = vmul.f32 %v1220, %v1232
        %v1258 = vmul.f32 %v1221, %v1232
        %v1259 = vmul.f32 %v1222, %v1232
        %v1260 = vmul.f32 %v1223, %v1232
        %v1261 = vmul.f32 %v1224, %v1232
        %v1262 = vmul.f32 %v1225, %v1232
        %v1263 = vmul.f32 %v1226, %v1232
        %v1264 = vmul.f32 %v1227, %v1232
        %v1265 = vadd.f32 %v1062, %v1233
        %v1266 = vadd.f32 %v1063, %v1234
        %v1267 = vadd.f32 %v1064, %v1235
        %v1268 = vadd.f32 %v1065, %v1236
        %v1269 = vadd.f32 %v1066, %v1237
        %v1270 = vadd.f32 %v1067, %v1238
        %v1271 = vadd.f32 %v1068, %v1239
        %v1272 = vadd.f32 %v1069, %v1240
        %v1273 = vadd.f32 %v1070, %v1241
        %v1274 = vadd.f32 %v1071, %v1242
        %v1275 = vadd.f32 %v1072, %v1243
        %v1276 = vadd.f32 %v1073, %v1244
        %v1277 = vadd.f32 %v1074, %v1245
        %v1278 = vadd.f32 %v1075, %v1246
        %v1279 = vadd.f32 %v1076, %v1247
        %v1280 = vadd.f32 %v1077, %v1248
        %v1281 = vadd.f32 %v1078, %v1249
        %v1282 = vadd.f32 %v1079, %v1250
        %v1283 = vadd.f32 %v1080, %v1251
        %v1284 = vadd.f32 %v1081, %v1252
        %v1285 = vadd.f32 %v1082, %v1253
        %v1286 = vadd.f32 %v1083, %v1254
        %v1287 = vadd.f32 %v1084, %v1255
        %v1288 = vadd.f32 %v1085, %v1256
        %v1289 = vadd.f32 %v1086, %v1257
        %v1290 = vadd.f32 %v1087, %v1258
        %v1291 = vadd.f32 %v1088, %v1259
        %v1292 = vadd.f32 %v1089, %v1260
        %v1293 = vadd.f32 %v1090, %v1261
        %v1294 = vadd.f32 %v1091, %v1262
        %v1295 = vadd.f32 %v1092, %v1263
        %v1296 = vadd.f32 %v1093, %v1264
        %v1297 = vld [vmem:[%s1094 + $0x2] sm:$0xff]
        %v1298 = vld [vmem:[%s1094 + $0xa] sm:$0xff]
        %v1299 = vld [vmem:[%s1094 + $0x1a] sm:$0xff]
        %v1300 = vld [vmem:[%s1094 + $0x22] sm:$0xff]
        %v1301 = vld [vmem:[%s1094 + $0x32] sm:$0xff]
        %v1302 = vld [vmem:[%s1094 + $0x3a] sm:$0xff]
        %v1303 = vld [vmem:[%s1094 + $0x4a] sm:$0xff]
        %v1304 = vld [vmem:[%s1094 + $0x52] sm:$0xff]
        %v1305 = vld [vmem:[%s1094 + $0x62] sm:$0xff]
        %v1306 = vld [vmem:[%s1094 + $0x6a] sm:$0xff]
        %v1307 = vld [vmem:[%s1094 + $0x7a] sm:$0xff]
        %v1308 = vld [vmem:[%s1094 + $0x82] sm:$0xff]
        %v1309 = vld [vmem:[%s1094 + $0x92] sm:$0xff]
        %v1310 = vld [vmem:[%s1094 + $0x9a] sm:$0xff]
        %v1311 = vld [vmem:[%s1094 + $0xaa] sm:$0xff]
        %v1312 = vld [vmem:[%s1094 + $0xb2] sm:$0xff]
        %v1313 = vld [vmem:[%s1094 + $0xc2] sm:$0xff]
        %v1314 = vld [vmem:[%s1094 + $0xca] sm:$0xff]
        %v1315 = vld [vmem:[%s1094 + $0xda] sm:$0xff]
        %v1316 = vld [vmem:[%s1094 + $0xe2] sm:$0xff]
        %v1317 = vld [vmem:[%s1094 + $0xf2] sm:$0xff]
        %v1318 = vld [vmem:[%s1094 + $0xfa] sm:$0xff]
        %v1319 = vld [vmem:[%s1094 + $0x10a] sm:$0xff]
        %v1320 = vld [vmem:[%s1094 + $0x112] sm:$0xff]
        %v1321 = vld [vmem:[%s1094 + $0x122] sm:$0xff]
        %v1322 = vld [vmem:[%s1094 + $0x12a] sm:$0xff]
        %v1323 = vld [vmem:[%s1094 + $0x13a] sm:$0xff]
        %v1324 = vld [vmem:[%s1094 + $0x142] sm:$0xff]
        %v1325 = vld [vmem:[%s1094 + $0x152] sm:$0xff]
        %v1326 = vld [vmem:[%s1094 + $0x15a] sm:$0xff]
        %v1327 = vld [vmem:[%s1094 + $0x16a] sm:$0xff]
        %v1328 = vld [vmem:[%s1094 + $0x172] sm:$0xff]
        %v1329 = vld [vmem:[#allocation8 + $0x8] sm:$0x1]
        %v1330 = vlaneseq
        %v1331 = vshrl.u32 %v1330, 7
        %v1332 = vsub.s32 0, %v1331
        %v1333 = vrot.slane %v1329, %v1332
        %v1334 = vmul.f32 %v1297, %v1333
        %v1335 = vmul.f32 %v1298, %v1333
        %v1336 = vmul.f32 %v1299, %v1333
        %v1337 = vmul.f32 %v1300, %v1333
        %v1338 = vmul.f32 %v1301, %v1333
        %v1339 = vmul.f32 %v1302, %v1333
        %v1340 = vmul.f32 %v1303, %v1333
        %v1341 = vmul.f32 %v1304, %v1333
        %v1342 = vmul.f32 %v1305, %v1333
        %v1343 = vmul.f32 %v1306, %v1333
        %v1344 = vmul.f32 %v1307, %v1333
        %v1345 = vmul.f32 %v1308, %v1333
        %v1346 = vmul.f32 %v1309, %v1333
        %v1347 = vmul.f32 %v1310, %v1333
        %v1348 = vmul.f32 %v1311, %v1333
        %v1349 = vmul.f32 %v1312, %v1333
        %v1350 = vmul.f32 %v1313, %v1333
        %v1351 = vmul.f32 %v1314, %v1333
        %v1352 = vmul.f32 %v1315, %v1333
        %v1353 = vmul.f32 %v1316, %v1333
        %v1354 = vmul.f32 %v1317, %v1333
        %v1355 = vmul.f32 %v1318, %v1333
        %v1356 = vmul.f32 %v1319, %v1333
        %v1357 = vmul.f32 %v1320, %v1333
        %v1358 = vmul.f32 %v1321, %v1333
        %v1359 = vmul.f32 %v1322, %v1333
        %v1360 = vmul.f32 %v1323, %v1333
        %v1361 = vmul.f32 %v1324, %v1333
        %v1362 = vmul.f32 %v1325, %v1333
        %v1363 = vmul.f32 %v1326, %v1333
        %v1364 = vmul.f32 %v1327, %v1333
        %v1365 = vmul.f32 %v1328, %v1333
        %v1366 = vadd.f32 %v1164, %v1334
        %v1367 = vadd.f32 %v1165, %v1335
        %v1368 = vadd.f32 %v1166, %v1336
        %v1369 = vadd.f32 %v1167, %v1337
        %v1370 = vadd.f32 %v1168, %v1338
        %v1371 = vadd.f32 %v1169, %v1339
        %v1372 = vadd.f32 %v1170, %v1340
        %v1373 = vadd.f32 %v1171, %v1341
        %v1374 = vadd.f32 %v1172, %v1342
        %v1375 = vadd.f32 %v1173, %v1343
        %v1376 = vadd.f32 %v1174, %v1344
        %v1377 = vadd.f32 %v1175, %v1345
        %v1378 = vadd.f32 %v1176, %v1346
        %v1379 = vadd.f32 %v1177, %v1347
        %v1380 = vadd.f32 %v1178, %v1348
        %v1381 = vadd.f32 %v1179, %v1349
        %v1382 = vadd.f32 %v1180, %v1350
        %v1383 = vadd.f32 %v1181, %v1351
        %v1384 = vadd.f32 %v1182, %v1352
        %v1385 = vadd.f32 %v1183, %v1353
        %v1386 = vadd.f32 %v1184, %v1354
        %v1387 = vadd.f32 %v1185, %v1355
        %v1388 = vadd.f32 %v1186, %v1356
        %v1389 = vadd.f32 %v1187, %v1357
        %v1390 = vadd.f32 %v1188, %v1358
        %v1391 = vadd.f32 %v1189, %v1359
        %v1392 = vadd.f32 %v1190, %v1360
        %v1393 = vadd.f32 %v1191, %v1361
        %v1394 = vadd.f32 %v1192, %v1362
        %v1395 = vadd.f32 %v1193, %v1363
        %v1396 = vadd.f32 %v1194, %v1364
        %v1397 = vadd.f32 %v1195, %v1365
        %v1398 = vadd.f32 %v1366, %v1265
        %v1399 = vadd.f32 %v1367, %v1266
        %v1400 = vadd.f32 %v1368, %v1267
        %v1401 = vadd.f32 %v1369, %v1268
        %v1402 = vadd.f32 %v1370, %v1269
        %v1403 = vadd.f32 %v1371, %v1270
        %v1404 = vadd.f32 %v1372, %v1271
        %v1405 = vadd.f32 %v1373, %v1272
        %v1406 = vadd.f32 %v1374, %v1273
        %v1407 = vadd.f32 %v1375, %v1274
        %v1408 = vadd.f32 %v1376, %v1275
        %v1409 = vadd.f32 %v1377, %v1276
        %v1410 = vadd.f32 %v1378, %v1277
        %v1411 = vadd.f32 %v1379, %v1278
        %v1412 = vadd.f32 %v1380, %v1279
        %v1413 = vadd.f32 %v1381, %v1280
        %v1414 = vadd.f32 %v1382, %v1281
        %v1415 = vadd.f32 %v1383, %v1282
        %v1416 = vadd.f32 %v1384, %v1283
        %v1417 = vadd.f32 %v1385, %v1284
        %v1418 = vadd.f32 %v1386, %v1285
        %v1419 = vadd.f32 %v1387, %v1286
        %v1420 = vadd.f32 %v1388, %v1287
        %v1421 = vadd.f32 %v1389, %v1288
        %v1422 = vadd.f32 %v1390, %v1289
        %v1423 = vadd.f32 %v1391, %v1290
        %v1424 = vadd.f32 %v1392, %v1291
        %v1425 = vadd.f32 %v1393, %v1292
        %v1426 = vadd.f32 %v1394, %v1293
        %v1427 = vadd.f32 %v1395, %v1294
        %v1428 = vadd.f32 %v1396, %v1295
        %v1429 = vadd.f32 %v1397, %v1296
        %v1430 = vld [vmem:[%s3] sm:$0x1]
        %v1432 = vlaneseq
        %v1433 = vshrl.u32 %v1432, 7
        %v1434 = vsub.s32 0, %v1433
        %v1435 = vrot.slane %v1430, %v1434
        %v1437 = vadd.f32 %v1398, %v1435
        %v1438 = vadd.f32 %v1399, %v1435
        %v1439 = vadd.f32 %v1400, %v1435
        %v1440 = vadd.f32 %v1401, %v1435
        %v1441 = vadd.f32 %v1402, %v1435
        %v1442 = vadd.f32 %v1403, %v1435
        %v1443 = vadd.f32 %v1404, %v1435
        %v1444 = vadd.f32 %v1405, %v1435
        %v1445 = vadd.f32 %v1406, %v1435
        %v1446 = vadd.f32 %v1407, %v1435
        %v1447 = vadd.f32 %v1408, %v1435
        %v1448 = vadd.f32 %v1409, %v1435
        %v1449 = vadd.f32 %v1410, %v1435
        %v1450 = vadd.f32 %v1411, %v1435
        %v1451 = vadd.f32 %v1412, %v1435
        %v1452 = vadd.f32 %v1413, %v1435
        %v1453 = vadd.f32 %v1414, %v1435
        %v1454 = vadd.f32 %v1415, %v1435
        %v1455 = vadd.f32 %v1416, %v1435
        %v1456 = vadd.f32 %v1417, %v1435
        %v1457 = vadd.f32 %v1418, %v1435
        %v1458 = vadd.f32 %v1419, %v1435
        %v1459 = vadd.f32 %v1420, %v1435
        %v1460 = vadd.f32 %v1421, %v1435
        %v1461 = vadd.f32 %v1422, %v1435
        %v1462 = vadd.f32 %v1423, %v1435
        %v1463 = vadd.f32 %v1424, %v1435
        %v1464 = vadd.f32 %v1425, %v1435
        %v1465 = vadd.f32 %v1426, %v1435
        %v1466 = vadd.f32 %v1427, %v1435
        %v1467 = vadd.f32 %v1428, %v1435
        %v1468 = vadd.f32 %v1429, %v1435
        %v1469 = vmax.f32 %v1437, 0.0
        %v1470 = vmax.f32 %v1438, 0.0
        %v1471 = vmax.f32 %v1439, 0.0
        %v1472 = vmax.f32 %v1440, 0.0
        %v1473 = vmax.f32 %v1441, 0.0
        %v1474 = vmax.f32 %v1442, 0.0
        %v1475 = vmax.f32 %v1443, 0.0
        %v1476 = vmax.f32 %v1444, 0.0
        %v1477 = vmax.f32 %v1445, 0.0
        %v1478 = vmax.f32 %v1446, 0.0
        %v1479 = vmax.f32 %v1447, 0.0
        %v1480 = vmax.f32 %v1448, 0.0
        %v1481 = vmax.f32 %v1449, 0.0
        %v1482 = vmax.f32 %v1450, 0.0
        %v1483 = vmax.f32 %v1451, 0.0
        %v1484 = vmax.f32 %v1452, 0.0
        %v1485 = vmax.f32 %v1453, 0.0
        %v1486 = vmax.f32 %v1454, 0.0
        %v1487 = vmax.f32 %v1455, 0.0
        %v1488 = vmax.f32 %v1456, 0.0
        %v1489 = vmax.f32 %v1457, 0.0
        %v1490 = vmax.f32 %v1458, 0.0
        %v1491 = vmax.f32 %v1459, 0.0
        %v1492 = vmax.f32 %v1460, 0.0
        %v1493 = vmax.f32 %v1461, 0.0
        %v1494 = vmax.f32 %v1462, 0.0
        %v1495 = vmax.f32 %v1463, 0.0
        %v1496 = vmax.f32 %v1464, 0.0
        %v1497 = vmax.f32 %v1465, 0.0
        %v1498 = vmax.f32 %v1466, 0.0
        %v1499 = vmax.f32 %v1467, 0.0
        %v1500 = vmax.f32 %v1468, 0.0
        %v1501 = vpack.c.bf16 %v1470, %v1469
        %v1502 = vpack.c.bf16 %v1472, %v1471
        %v1503 = vpack.c.bf16 %v1474, %v1473
        %v1504 = vpack.c.bf16 %v1476, %v1475
        %v1505 = vpack.c.bf16 %v1478, %v1477
        %v1506 = vpack.c.bf16 %v1480, %v1479
        %v1507 = vpack.c.bf16 %v1482, %v1481
        %v1508 = vpack.c.bf16 %v1484, %v1483
        %v1509 = vpack.c.bf16 %v1486, %v1485
        %v1510 = vpack.c.bf16 %v1488, %v1487
        %v1511 = vpack.c.bf16 %v1490, %v1489
        %v1512 = vpack.c.bf16 %v1492, %v1491
        %v1513 = vpack.c.bf16 %v1494, %v1493
        %v1514 = vpack.c.bf16 %v1496, %v1495
        %v1515 = vpack.c.bf16 %v1498, %v1497
        %v1516 = vpack.c.bf16 %v1500, %v1499
        %v1517 = vld [vmem:[#allocation9] sm:$0xf]
        %v1518 = vld [vmem:[#allocation9 + $0x4] sm:$0xf]
        %v1519 = vld [vmem:[#allocation9 + $0x8] sm:$0xf]
        %v1520 = vld [vmem:[#allocation9 + $0xc] sm:$0xf]
        %v1521 = vld [vmem:[#allocation9 + $0x10] sm:$0xf]
        %v1522 = vld [vmem:[#allocation9 + $0x14] sm:$0xf]
        %v1523 = vld [vmem:[#allocation9 + $0x18] sm:$0xf]
        %v1524 = vld [vmem:[#allocation9 + $0x1c] sm:$0xf]
        %v1525 = vld [vmem:[#allocation9 + $0x20] sm:$0xf]
        %v1526 = vld [vmem:[#allocation9 + $0x24] sm:$0xf]
        %v1527 = vld [vmem:[#allocation9 + $0x28] sm:$0xf]
        %v1528 = vld [vmem:[#allocation9 + $0x2c] sm:$0xf]
        %v1529 = vld [vmem:[#allocation9 + $0x30] sm:$0xf]
        %v1530 = vld [vmem:[#allocation9 + $0x34] sm:$0xf]
        %v1531 = vld [vmem:[#allocation9 + $0x38] sm:$0xf]
        %v1532 = vld [vmem:[#allocation9 + $0x3c] sm:$0xf]
        %v1533 = vld [vmem:[%s5] sm:$0x1]
        %v1535 = vlaneseq
        %v1536 = vshrl.u32 %v1535, 7
        %v1537 = vsub.s32 0, %v1536
        %v1538 = vrot.slane %v1533, %v1537
        %v1556 = vunpack.c.l.b16 %v1517
        %v1557 = vunpack.c.l.b16 %v1518
        %v1558 = vunpack.c.l.b16 %v1519
        %v1559 = vunpack.c.l.b16 %v1520
        %v1560 = vunpack.c.l.b16 %v1521
        %v1561 = vunpack.c.l.b16 %v1522
        %v1562 = vunpack.c.l.b16 %v1523
        %v1563 = vunpack.c.l.b16 %v1524
        %v1564 = vunpack.c.l.b16 %v1525
        %v1565 = vunpack.c.l.b16 %v1526
        %v1566 = vunpack.c.l.b16 %v1527
        %v1567 = vunpack.c.l.b16 %v1528
        %v1568 = vunpack.c.l.b16 %v1529
        %v1569 = vunpack.c.l.b16 %v1530
        %v1570 = vunpack.c.l.b16 %v1531
        %v1571 = vunpack.c.l.b16 %v1532
        %v1572 = vpack.c.b16 %v1557, %v1556
        %v1573 = vpack.c.b16 %v1559, %v1558
        %v1574 = vpack.c.b16 %v1561, %v1560
        %v1575 = vpack.c.b16 %v1563, %v1562
        %v1576 = vpack.c.b16 %v1565, %v1564
        %v1577 = vpack.c.b16 %v1567, %v1566
        %v1578 = vpack.c.b16 %v1569, %v1568
        %v1579 = vpack.c.b16 %v1571, %v1570
        %1588 = vmatprep.subr.bf16.mxu0 0
        %1589 = vmatpush1.bf16.msra.mxu0 %v1572
        %1590 = vmatprep.subr.bf16.mxu0 0
        %1591 = vmatpush1.bf16.msra.mxu0 %v1573
        %1592 = vmatprep.subr.bf16.mxu0 0
        %1593 = vmatpush1.bf16.msra.mxu0 %v1574
        %1594 = vmatprep.subr.bf16.mxu0 0
        %1595 = vmatpush1.bf16.msra.mxu0 %v1575
        %1596 = vmatprep.subr.bf16.mxu0 0
        %1597 = vmatpush1.bf16.msra.mxu0 %v1576
        %1598 = vmatprep.subr.bf16.mxu0 0
        %1599 = vmatpush1.bf16.msra.mxu0 %v1577
        %1600 = vmatprep.subr.bf16.mxu0 0
        %1601 = vmatpush1.bf16.msra.mxu0 %v1578
        %1602 = vmatprep.subr.bf16.mxu0 0
        %1603 = vmatpush1.bf16.msra.mxu0 %v1579
        %1604 = vmatprep.subr.bf16.mxu0 0
        %1605 = vmatpush1.bf16.msra.mxu0 0
        %1606 = vmatprep.subr.bf16.mxu0 0
        %1607 = vmatpush1.bf16.msra.mxu0 0
        %1608 = vmatprep.subr.bf16.mxu0 0
        %1609 = vmatpush1.bf16.msra.mxu0 0
        %1610 = vmatprep.subr.bf16.mxu0 0
        %1611 = vmatpush1.bf16.msra.mxu0 0
        %1612 = vmatprep.subr.bf16.mxu0 0
        %1613 = vmatpush1.bf16.msra.mxu0 0
        %1614 = vmatprep.subr.bf16.mxu0 0
        %1615 = vmatpush1.bf16.msra.mxu0 0
        %1616 = vmatprep.subr.bf16.mxu0 0
        %1617 = vmatpush1.bf16.msra.mxu0 0
        %1618 = vmatprep.subr.bf16.mxu0 0
        %1619 = vmatpush1.bf16.msra.mxu0 0
        %1620 = vmatprep.mubr.bf16.mxu0 0
        %1621 = vmatmul.mubr.bf16.gmra.mrb[0].mxu0 %v1501
        %v1622 = vpop.f32.mrb[0].mxu0
        %v1623 = vadd.f32 %v1538, %v1622
        %v1624 = vpop.f32.mrb[0].mxu0
        %v1625 = vpop.f32.mrb[0].mxu0
        %v1626 = vadd.f32 %v1538, %v1625
        %v1627 = vpop.f32.mrb[0].mxu0
        %1628 = vmatprep.mubr.bf16.mxu0 0
        %1629 = vmatmul.mubr.bf16.gmra.mrb[0].mxu0 %v1502
        %v1630 = vpop.f32.mrb[0].mxu0
        %v1631 = vadd.f32 %v1538, %v1630
        %v1632 = vpop.f32.mrb[0].mxu0
        %v1633 = vpop.f32.mrb[0].mxu0
        %v1634 = vadd.f32 %v1538, %v1633
        %v1635 = vpop.f32.mrb[0].mxu0
        %1636 = vmatprep.mubr.bf16.mxu0 0
        %1637 = vmatmul.mubr.bf16.gmra.mrb[0].mxu0 %v1503
        %v1638 = vpop.f32.mrb[0].mxu0
        %v1639 = vadd.f32 %v1538, %v1638
        %v1640 = vpop.f32.mrb[0].mxu0
        %v1641 = vpop.f32.mrb[0].mxu0
        %v1642 = vadd.f32 %v1538, %v1641
        %v1643 = vpop.f32.mrb[0].mxu0
        %1644 = vmatprep.mubr.bf16.mxu0 0
        %1645 = vmatmul.mubr.bf16.gmra.mrb[0].mxu0 %v1504
        %v1646 = vpop.f32.mrb[0].mxu0
        %v1647 = vadd.f32 %v1538, %v1646
        %v1648 = vpop.f32.mrb[0].mxu0
        %v1649 = vpop.f32.mrb[0].mxu0
        %v1650 = vadd.f32 %v1538, %v1649
        %v1651 = vpop.f32.mrb[0].mxu0
        %1652 = vmatprep.mubr.bf16.mxu0 0
        %1653 = vmatmul.mubr.bf16.gmra.mrb[0].mxu0 %v1505
        %v1654 = vpop.f32.mrb[0].mxu0
        %v1655 = vadd.f32 %v1538, %v1654
        %v1656 = vpop.f32.mrb[0].mxu0
        %v1657 = vpop.f32.mrb[0].mxu0
        %v1658 = vadd.f32 %v1538, %v1657
        %v1659 = vpop.f32.mrb[0].mxu0
        %1660 = vmatprep.mubr.bf16.mxu0 0
        %1661 = vmatmul.mubr.bf16.gmra.mrb[0].mxu0 %v1506
        %v1662 = vpop.f32.mrb[0].mxu0
        %v1663 = vadd.f32 %v1538, %v1662
        %v1664 = vpop.f32.mrb[0].mxu0
        %v1665 = vpop.f32.mrb[0].mxu0
        %v1666 = vadd.f32 %v1538, %v1665
        %v1667 = vpop.f32.mrb[0].mxu0
        %1668 = vmatprep.mubr.bf16.mxu0 0
        %1669 = vmatmul.mubr.bf16.gmra.mrb[0].mxu0 %v1507
        %v1670 = vpop.f32.mrb[0].mxu0
        %v1671 = vadd.f32 %v1538, %v1670
        %v1672 = vpop.f32.mrb[0].mxu0
        %v1673 = vpop.f32.mrb[0].mxu0
        %v1674 = vadd.f32 %v1538, %v1673
        %v1675 = vpop.f32.mrb[0].mxu0
        %1676 = vmatprep.mubr.bf16.mxu0 0
        %1677 = vmatmul.mubr.bf16.gmra.mrb[0].mxu0 %v1508
        %v1678 = vpop.f32.mrb[0].mxu0
        %v1679 = vadd.f32 %v1538, %v1678
        %v1680 = vpop.f32.mrb[0].mxu0
        %v1681 = vpop.f32.mrb[0].mxu0
        %v1682 = vadd.f32 %v1538, %v1681
        %v1683 = vpop.f32.mrb[0].mxu0
        %1684 = vmatprep.mubr.bf16.mxu0 0
        %1685 = vmatmul.mubr.bf16.gmra.mrb[0].mxu0 %v1509
        %v1686 = vpop.f32.mrb[0].mxu0
        %v1687 = vadd.f32 %v1538, %v1686
        %v1688 = vpop.f32.mrb[0].mxu0
        %v1689 = vpop.f32.mrb[0].mxu0
        %v1690 = vadd.f32 %v1538, %v1689
        %v1691 = vpop.f32.mrb[0].mxu0
        %1692 = vmatprep.mubr.bf16.mxu0 0
        %1693 = vmatmul.mubr.bf16.gmra.mrb[0].mxu0 %v1510
        %v1694 = vpop.f32.mrb[0].mxu0
        %v1695 = vadd.f32 %v1538, %v1694
        %v1696 = vpop.f32.mrb[0].mxu0
        %v1697 = vpop.f32.mrb[0].mxu0
        %v1698 = vadd.f32 %v1538, %v1697
        %v1699 = vpop.f32.mrb[0].mxu0
        %1700 = vmatprep.mubr.bf16.mxu0 0
        %1701 = vmatmul.mubr.bf16.gmra.mrb[0].mxu0 %v1511
        %v1702 = vpop.f32.mrb[0].mxu0
        %v1703 = vadd.f32 %v1538, %v1702
        %v1704 = vpop.f32.mrb[0].mxu0
        %v1705 = vpop.f32.mrb[0].mxu0
        %v1706 = vadd.f32 %v1538, %v1705
        %v1707 = vpop.f32.mrb[0].mxu0
        %1708 = vmatprep.mubr.bf16.mxu0 0
        %1709 = vmatmul.mubr.bf16.gmra.mrb[0].mxu0 %v1512
        %v1710 = vpop.f32.mrb[0].mxu0
        %v1711 = vadd.f32 %v1538, %v1710
        %v1712 = vpop.f32.mrb[0].mxu0
        %v1713 = vpop.f32.mrb[0].mxu0
        %v1714 = vadd.f32 %v1538, %v1713
        %v1715 = vpop.f32.mrb[0].mxu0
        %1716 = vmatprep.mubr.bf16.mxu0 0
        %1717 = vmatmul.mubr.bf16.gmra.mrb[0].mxu0 %v1513
        %v1718 = vpop.f32.mrb[0].mxu0
        %v1719 = vadd.f32 %v1538, %v1718
        %v1720 = vpop.f32.mrb[0].mxu0
        %v1721 = vpop.f32.mrb[0].mxu0
        %v1722 = vadd.f32 %v1538, %v1721
        %v1723 = vpop.f32.mrb[0].mxu0
        %1724 = vmatprep.mubr.bf16.mxu0 0
        %1725 = vmatmul.mubr.bf16.gmra.mrb[0].mxu0 %v1514
        %v1726 = vpop.f32.mrb[0].mxu0
        %v1727 = vadd.f32 %v1538, %v1726
        %v1728 = vpop.f32.mrb[0].mxu0
        %v1729 = vpop.f32.mrb[0].mxu0
        %v1730 = vadd.f32 %v1538, %v1729
        %v1731 = vpop.f32.mrb[0].mxu0
        %1732 = vmatprep.mubr.bf16.mxu0 0
        %1733 = vmatmul.mubr.bf16.gmra.mrb[0].mxu0 %v1515
        %v1734 = vpop.f32.mrb[0].mxu0
        %v1735 = vadd.f32 %v1538, %v1734
        %v1736 = vpop.f32.mrb[0].mxu0
        %v1737 = vpop.f32.mrb[0].mxu0
        %v1738 = vadd.f32 %v1538, %v1737
        %v1739 = vpop.f32.mrb[0].mxu0
        %1740 = vmatprep.mubr.bf16.mxu0 0
        %1741 = vmatmul.mubr.bf16.gmra.mrb[0].mxu0 %v1516
        %v1742 = vpop.f32.mrb[0].mxu0
        %v1743 = vadd.f32 %v1538, %v1742
        %v1744 = vpop.f32.mrb[0].mxu0
        %v1745 = vpop.f32.mrb[0].mxu0
        %v1746 = vadd.f32 %v1538, %v1745
        %v1747 = vpop.f32.mrb[0].mxu0
        %1748 = vdwg.mxu0
        %1749 = vst [vmem:[%s376] sm:$0xff] %v1623
        %1750 = vst [vmem:[%s376 + $0x8] sm:$0xff] %v1626
        %1751 = vst [vmem:[%s376 + $0x10] sm:$0xff] %v1631
        %1752 = vst [vmem:[%s376 + $0x18] sm:$0xff] %v1634
        %1753 = vst [vmem:[%s376 + $0x20] sm:$0xff] %v1639
        %1754 = vst [vmem:[%s376 + $0x28] sm:$0xff] %v1642
        %1755 = vst [vmem:[%s376 + $0x30] sm:$0xff] %v1647
        %1756 = vst [vmem:[%s376 + $0x38] sm:$0xff] %v1650
        %1757 = vst [vmem:[%s376 + $0x40] sm:$0xff] %v1655
        %1758 = vst [vmem:[%s376 + $0x48] sm:$0xff] %v1658
        %1759 = vst [vmem:[%s376 + $0x50] sm:$0xff] %v1663
        %1760 = vst [vmem:[%s376 + $0x58] sm:$0xff] %v1666
        %1761 = vst [vmem:[%s376 + $0x60] sm:$0xff] %v1671
        %1762 = vst [vmem:[%s376 + $0x68] sm:$0xff] %v1674
        %1763 = vst [vmem:[%s376 + $0x70] sm:$0xff] %v1679
        %1764 = vst [vmem:[%s376 + $0x78] sm:$0xff] %v1682
        %1765 = vst [vmem:[%s376 + $0x80] sm:$0xff] %v1687
        %1766 = vst [vmem:[%s376 + $0x88] sm:$0xff] %v1690
        %1767 = vst [vmem:[%s376 + $0x90] sm:$0xff] %v1695
        %1768 = vst [vmem:[%s376 + $0x98] sm:$0xff] %v1698
        %1769 = vst [vmem:[%s376 + $0xa0] sm:$0xff] %v1703
        %1770 = vst [vmem:[%s376 + $0xa8] sm:$0xff] %v1706
        %1771 = vst [vmem:[%s376 + $0xb0] sm:$0xff] %v1711
        %1772 = vst [vmem:[%s376 + $0xb8] sm:$0xff] %v1714
        %1773 = vst [vmem:[%s376 + $0xc0] sm:$0xff] %v1719
        %1774 = vst [vmem:[%s376 + $0xc8] sm:$0xff] %v1722
        %1775 = vst [vmem:[%s376 + $0xd0] sm:$0xff] %v1727
        %1776 = vst [vmem:[%s376 + $0xd8] sm:$0xff] %v1730
        %1777 = vst [vmem:[%s376 + $0xe0] sm:$0xff] %v1735
        %1778 = vst [vmem:[%s376 + $0xe8] sm:$0xff] %v1738
        %1779 = vst [vmem:[%s376 + $0xf0] sm:$0xff] %v1743
        %1780 = vst [vmem:[%s376 + $0xf8] sm:$0xff] %v1746
        %s1781 = sand.u32 %s193, 1
        %s1782 = scalar_lea.sflag [#allocation5], %s1781
        %s1783 = sand.u32 %s193, 1
        %s1784 = smul.addr %s1783, 256
        %s1785 = scalar_lea.vmem [#allocation11], %s1784
        // Predicated region
        $region61: #{tpu_custom_call.1} parent=43 // pred_check
          %p1786 = pneg %p203
        $region62: #{tpu_custom_call.1} parent=43 // pred_check_branch
          %1788 = sbr.rel (%p1786) target = $region64
        $region63: #{tpu_custom_call.1} parent=43 // pred_region
          %s1789 = smul.u32 16, %s32
          %s1791 = ssub.s32 4096, 4096
          %1792 = vsyncadd %s1782, %s1791
          %s1793 = smul.addr %s1789, 2
          %s1794 = smul.addr %s31, 32
          %s1795 = sadd.s32 %s1793, %s1794
          %s1796 = smul.addr %s1795, 128
          %s1797 = scalar_lea.hbm %s6, %s1796
          %s1798 = sshll.u32 %s1785, 4
          %s1799 = int_to_ptr.vmem [resolvable:$true] %s1798
          %1804 = dma.vmem_to_hbm [thread:$0]  %s1799, 4096, %s1797, %s1782, 128, 128, 8
        $region64: #{tpu_custom_call.1} parent=43 // pred_fallthru
          _
      $region44: #{tpu_custom_call.1} parent=5 // pred_fallthru
        _
      %p1805 = scmp.le.s32.totalorder 2, %s22
      // Predicated region
      $region65: #{tpu_custom_call.1} parent=5 // pred_check
        %p1806 = pneg %p1805
      $region66: #{tpu_custom_call.1} parent=5 // pred_check_branch
        %1808 = sbr.rel (%p1806) target = $region68
      $region67: #{tpu_custom_call.1} parent=5 // pred_region
        %s1809 = ssub.s32 %s22, 2
        // Predicated region
        $region69: #{tpu_custom_call.1} parent=67 // pred_check
          %p1810 = pneg %p209
        $region70: #{tpu_custom_call.1} parent=67 // pred_check_branch
          %1812 = sbr.rel (%p1810) target = $region72
        $region71: #{tpu_custom_call.1} parent=67 // pred_region
          %s1813 = sand.u32 %s194, 1
          %s1814 = scalar_lea.sflag [#allocation5], %s1813
          %s1815 = sand.u32 %s194, 1
          %s1816 = smul.addr %s1815, 256
          %s1817 = scalar_lea.vmem [#allocation11], %s1816
          %1818 = dma.done %s1814, 4096
        $region72: #{tpu_custom_call.1} parent=67 // pred_fallthru
          _
      $region68: #{tpu_custom_call.1} parent=5 // pred_fallthru
        _
    $region6: #{tpu_custom_call.1} parent=1 // loop_footer
      %s26 = sadd.s32 1, %s22
    $region7: #{tpu_custom_call.1} parent=1 // loop_footer_branch
      %21 = sbr.rel target = $region3
    $region8: #{tpu_custom_call.1} parent=1 // loop_exit
      _
    %1819 = vsyncpa [#allocation4], 1
    %s1820 = scalar_lea.sflag [#allocation4], 1
    %1821 = vsyncpa %s1820, 1
    %1822 = vsyncpa [#allocation7], 1
    %s1823 = scalar_lea.sflag [#allocation7], 1
    %1824 = vsyncpa %s1823, 1
    %1825 = vsyncpa [#allocation10], 1
    %1826 = vsyncpa [#allocation5], 1
    %s1827 = scalar_lea.sflag [#allocation5], 1
    %1828 = vsyncpa %s1827, 1

</llo_original>
